<compile_context>
chip_gen: v5e
topology: v5e:2x2
jax: 0.10.0
libtpu: 0.0.40
codegen_flags: <defaults>
</compile_context>

<pallas_src>
import functools

import jax
import jax.numpy as jnp
from jax import lax
from jax.experimental import pallas as pl
from jax.experimental.pallas import tpu as pltpu

SUB = 8          # sublane row-block for the in-register channel reduction
HW_TILE = 512    # lane tile for register carries (<= ~4 vregs per carry)


def _round_up(x, m):
    return ((x + m - 1) // m) * m


def _sublane_quantum(dtype):
    # (8,128) tiling for 32-bit dtypes, (16,128) for 16-bit, (32,128) for 8-bit.
    return max(8, 32 // jnp.dtype(dtype).itemsize)


def _vmem_capacity_bytes():
    try:
        return int(pltpu.get_tpu_info().vmem_capacity_bytes)
    except Exception:
        return 64 * 1024 * 1024        # conservative (v7x-sized) fallback


def _choose_channel_chunk(C, HW, itemsize, target_bytes, quantum):
    """Largest dtype-tiling-legal channel chunk that fits the VMEM budget."""
    bytes_per_row = max(1, HW * itemsize)
    max_ck = max(quantum, target_bytes // bytes_per_row)
    if C <= max_ck:
        return C                        # one chunk == full dim (always legal)
    best = 0
    d = quantum
    while d <= max_ck:
        if C % d == 0:
            best = d
        d += quantum
    if best:
        return best
    # No exact divisor fits the budget: quantum-aligned chunk; the last
    # (partial) chunk is masked inside the kernel.
    return (max_ck // quantum) * quantum


def _spatial_attention_kernel(w_ref, x_ref, o_ref, sum_sc, max_sc, pad_sc, *,
                              C, Ck, H, W, KS, PD, LP, needs_mask):
    # w_ref  : SMEM (2*KS*KS,)              flattened conv weight (OIHW order)
    # x_ref  : VMEM (1, Ck, HW)             one channel chunk, lane-dense spatial
    # o_ref  : VMEM (1, 1, HW)
    # sum_sc : VMEM (SUB, HW) f32           full-sublane running channel sum
    # max_sc : VMEM (SUB, HW) f32           full-sublane running channel max
    # pad_sc : VMEM (2, LP+HW+PD*W+PD) f32  zero-padded pooled maps (aligned)
    HW = H * W
    k = pl.program_id(1)
    nk = pl.num_programs(1)

    @pl.when(k == 0)
    def _():
        sum_sc[...] = jnp.zeros_like(sum_sc)
        max_sc[...] = jnp.full_like(max_sc, -jnp.inf)

    n_sub, rem = divmod(Ck, SUB)

    if needs_mask:
        valid = jnp.minimum(Ck, C - k * Ck)          # valid rows in this chunk
        sub_iota = lax.broadcasted_iota(jnp.int32, (SUB, 1), 0)

        def masked(blk, row0):
            keep = (row0 + sub_iota[:blk.shape[0]]) < valid
            return jnp.where(keep, blk, 0.0), jnp.where(keep, blk, -jnp.inf)
    else:
        def masked(blk, row0):
            return blk, blk

    # ---- streaming channel reduction ---------------------------------------
    # Full-sublane register carries per HW tile; only add/max per 8-row block.
    for lo in range(0, HW, HW_TILE):
        tl = min(HW_TILE, HW - lo)
        csum = jnp.zeros((SUB, tl), jnp.float32)
        cmax = jnp.full((SUB, tl), -jnp.inf, jnp.float32)

        if n_sub > 0:
            def body(s, carry, _lo=lo, _tl=tl):
                cs, cm = carry
                row0 = pl.multiple_of(s * SUB, SUB)
                blk = x_ref[0, pl.ds(row0, SUB), _lo:_lo + _tl].astype(jnp.float32)
                bs, bm = masked(blk, row0)
                return cs + bs, jnp.maximum(cm, bm)

            csum, cmax = lax.fori_loop(0, n_sub, body, (csum, cmax),
                                       unroll=min(8, n_sub))
        if rem > 0:
            row0 = n_sub * SUB
            blk = x_ref[0, pl.ds(row0, rem), lo:lo + tl].astype(jnp.float32)
            bs, bm = masked(blk, row0)
            csum = csum + jnp.pad(bs, ((0, SUB - rem), (0, 0)))
            cmax = jnp.maximum(cmax, jnp.pad(bm, ((0, SUB - rem), (0, 0)),
                                             constant_values=-jnp.inf))

        # one VMEM RMW of the accumulators per lane tile per grid step
        sum_sc[:, lo:lo + tl] = sum_sc[:, lo:lo + tl] + csum
        max_sc[:, lo:lo + tl] = jnp.maximum(max_sc[:, lo:lo + tl], cmax)

    # ---- finalize: cross-sublane reduce + KSxKS conv + sigmoid --------------
    @pl.when(k == nk - 1)
    def _():
        avg = jnp.sum(sum_sc[...], axis=0, keepdims=True) * (1.0 / C)   # (1,HW)
        mx = jnp.max(max_sc[...], axis=0, keepdims=True)                # (1,HW)

        trail = PD * W + PD
        # zero only the halo strips; data region starts lane-aligned at LP
        pad_sc[:, 0:LP] = jnp.zeros((2, LP), jnp.float32)
        pad_sc[:, LP + HW:LP + HW + trail] = jnp.zeros((2, trail), jnp.float32)
        pad_sc[0:1, LP:LP + HW] = avg
        pad_sc[1:2, LP:LP + HW] = mx

        base = LP - (PD * W + PD)
        col = lax.broadcasted_iota(jnp.int32, (1, HW), 1) % W
        acc = jnp.zeros((1, HW), jnp.float32)
        for j in range(KS):                  # column mask hoisted out of (c, i)
            dj = j - PD
            pj = jnp.zeros((1, HW), jnp.float32)
            for c in range(2):               # 0 = avg, 1 = max
                for i in range(KS):
                    wv = w_ref[c * KS * KS + i * KS + j]      # SMEM scalar
                    off = base + i * W + j
                    pj = pj + pad_sc[c:c + 1, off:off + HW] * wv
            if dj == 0:
                acc = acc + pj
            else:
                ok = (col + dj >= 0) & (col + dj < W)
                acc = acc + jnp.where(ok, pj, 0.0)
        o_ref[0] = jax.nn.sigmoid(acc).astype(o_ref.dtype)


def spatial_attention(x, weight, kernel_size=7):
    """x: (B, C, H, W); weight: (1, 2, k, k) (PyTorch OIHW), bias-free conv."""
    assert kernel_size in (3, 7), "kernel size must be 3 or 7"
    pd = 3 if kernel_size == 7 else 1
    B, C, H, W = x.shape
    assert weight.shape == (1, 2, kernel_size, kernel_size)
    HW = H * W
    itemsize = jnp.dtype(x.dtype).itemsize
    quantum = _sublane_quantum(x.dtype)

    # Generation-aware VMEM budgeting: ~1/8 of physical VMEM per input buffer
    # (16 MiB on v5e/v6e's 128 MiB, 8 MiB on v7x's 64 MiB), double-buffered.
    vmem_cap = _vmem_capacity_bytes()
    target_block_bytes = max(2 * 1024 * 1024,
                             min(vmem_cap // 8, 24 * 1024 * 1024))

    Ck = _choose_channel_chunk(C, HW, itemsize, target_block_bytes, quantum)
    n_chunks = pl.cdiv(C, Ck)
    needs_mask = (C % Ck) != 0

    LP = _round_up(pd * W + pd, 128)        # lane-aligned start of padded data
    plen = LP + HW + pd * W + pd

    x_flat = x.reshape(B, C, HW)                      # free reshape, no HBM pad
    w_flat = weight.reshape(-1).astype(jnp.float32)   # (2*k*k,)

    kernel = functools.partial(
        _spatial_attention_kernel, C=C, Ck=Ck, H=H, W=W,
        KS=kernel_size, PD=pd, LP=LP, needs_mask=needs_mask)

    # explicit VMEM budget: double-buffered x + out blocks + fixed scratch
    x_block = Ck * HW * itemsize
    out_block = HW * itemsize
    scratch = (2 * SUB * HW + 2 * plen) * 4
    vmem_needed = 2 * x_block + 2 * out_block + scratch
    vmem_limit = int(min(vmem_cap * 3 // 4,
                         max(vmem_needed + 8 * 1024 * 1024,
                             32 * 1024 * 1024)))

    cost = pl.CostEstimate(
        flops=B * (2 * C * HW + 2 * 2 * kernel_size * kernel_size * HW),
        transcendentals=B * HW,
        bytes_accessed=(B * C * HW * itemsize + B * HW * itemsize
                        + 2 * kernel_size * kernel_size * 4),
    )

    out_flat = pl.pallas_call(
        kernel,
        out_shape=jax.ShapeDtypeStruct((B, 1, HW), x.dtype),
        grid=(B, n_chunks),
        in_specs=[
            pl.BlockSpec(memory_space=pltpu.MemorySpace.SMEM),    # conv weights
            pl.BlockSpec((1, Ck, HW), lambda b, k: (b, k, 0)),    # x chunk
        ],
        out_specs=pl.BlockSpec((1, 1, HW), lambda b, k: (b, 0, 0)),
        scratch_shapes=[
            pltpu.VMEM((SUB, HW), jnp.float32),     # running channel sum
            pltpu.VMEM((SUB, HW), jnp.float32),     # running channel max
            pltpu.VMEM((2, plen), jnp.float32),     # padded pooled maps
        ],
        compiler_params=pltpu.CompilerParams(
            dimension_semantics=("parallel", "arbitrary"),
            vmem_limit_bytes=vmem_limit),
        cost_estimate=cost,
    )(w_flat, x_flat)

    return out_flat.reshape(B, 1, H, W)


def _reference(x, weight, kernel_size=7):
    pd = 3 if kernel_size == 7 else 1
    avg_out = jnp.mean(x, axis=1, keepdims=True)
    max_out = jnp.max(x, axis=1, keepdims=True)
    cat = jnp.concatenate([avg_out, max_out], axis=1)        # (B, 2, H, W)
    out = lax.conv_general_dilated(
        cat, weight, window_strides=(1, 1),
        padding=((pd, pd), (pd, pd)),
        dimension_numbers=("NCHW", "OIHW", "NCHW"))
    return jax.nn.sigmoid(out)


if __name__ == "__main__":
    key = jax.random.PRNGKey(0)
    kx, kw = jax.random.split(key)

    B, C, H, W = 2, 4, 16, 16
    KSIZE = 7
    x = jax.random.normal(kx, (B, C, H, W), dtype=jnp.float32)

    # Deterministic conv weight init (PyTorch default ~ U(-1/sqrt(fan_in), +)).
    fan_in = 2 * KSIZE * KSIZE
    bound = 1.0 / (fan_in ** 0.5)
    weight = jax.random.uniform(kw, (1, 2, KSIZE, KSIZE), dtype=jnp.float32,
                                minval=-bound, maxval=bound)

    out = jax.block_until_ready(spatial_attention(x, weight, KSIZE))
    ref = jax.block_until_ready(_reference(x, weight, KSIZE))

    assert out.shape == (B, 1, H, W)
    err = float(jnp.max(jnp.abs(out - ref)))
    assert err < 1e-5, f"max abs err = {err}"

    print("KERNEL_OK")
</pallas_src>

<mosaic_0001>
module attributes {stable_mosaic.version = 11 : i64} {
  func.func @_spatial_attention_kernel(%arg0: i32, %arg1: i32, %arg2: memref<98xf32, #tpu.memory_space<smem>>, %arg3: memref<1x4x256xf32, #tpu.memory_space<vmem>>, %arg4: memref<1x1x256xf32, #tpu.memory_space<vmem>>, %arg5: memref<8x256xf32, #tpu.memory_space<vmem>>, %arg6: memref<8x256xf32, #tpu.memory_space<vmem>>, %arg7: memref<2x435xf32, #tpu.memory_space<vmem>>) attributes {dimension_semantics = [#tpu.dimension_semantics<parallel>, #tpu.dimension_semantics<arbitrary>], iteration_bounds = array<i64: 2, 1>, scalar_prefetch = 0 : i64, scratch_operands = 3 : i64, tpu.core_type = #tpu.core_type<tc>, window_params = [{transform_indices = @transform_0, window_bounds = array<i64: 98>}, {transform_indices = @transform_1, window_bounds = array<i64: 1, 4, 256>}, {transform_indices = @transform_2, window_bounds = array<i64: 1, 1, 256>}]} {
    %c0_i32 = arith.constant 0 : i32
    %0 = arith.cmpi eq, %arg1, %c0_i32 : i32
    %1 = arith.extui %0 : i1 to i32
    %c0_i32_0 = arith.constant 0 : i32
    %2 = arith.cmpi ne, %1, %c0_i32_0 : i32
    scf.if %2 {
      %cst_16 = arith.constant 0.000000e+00 : f32
      %23 = vector.broadcast %cst_16 : f32 to vector<8x256xf32>
      %c0_17 = arith.constant 0 : index
      %c0_18 = arith.constant 0 : index
      %24 = vector.load %arg5[%c0_17, %c0_18] : memref<8x256xf32, #tpu.memory_space<vmem>>, vector<8x256xf32>
      tpu.vector_store %arg5[%c0_17, %c0_18], %23 {strides = array<i32>} : memref<8x256xf32, #tpu.memory_space<vmem>>, vector<8x256xf32>,
      %cst_19 = arith.constant 0xFF800000 : f32
      %25 = vector.broadcast %cst_19 : f32 to vector<8x256xf32>
      %c0_20 = arith.constant 0 : index
      %c0_21 = arith.constant 0 : index
      %26 = vector.load %arg6[%c0_20, %c0_21] : memref<8x256xf32, #tpu.memory_space<vmem>>, vector<8x256xf32>
      tpu.vector_store %arg6[%c0_20, %c0_21], %25 {strides = array<i32>} : memref<8x256xf32, #tpu.memory_space<vmem>>, vector<8x256xf32>,
    } else {
    }
    %cst = arith.constant 0.000000e+00 : f32
    %3 = vector.broadcast %cst : f32 to vector<8x256xf32>
    %cst_1 = arith.constant 0xFF800000 : f32
    %4 = vector.broadcast %cst_1 : f32 to vector<8x256xf32>
    %c0 = arith.constant 0 : index
    %c0_2 = arith.constant 0 : index
    %c0_3 = arith.constant 0 : index
    %5 = vector.load %arg3[%c0, %c0_2, %c0_3] : memref<1x4x256xf32, #tpu.memory_space<vmem>>, vector<1x4x256xf32>
    %6 = vector.shape_cast %5 : vector<1x4x256xf32> to vector<4x256xf32>
    %c0_i32_4 = arith.constant 0 : i32
    %7 = arith.sitofp %c0_i32_4 : i32 to f32
    %8 = vector.broadcast %7 : f32 to vector<4x256xf32>
    %9 = tpu.concatenate %6, %8 in 0 : vector<4x256xf32>, vector<4x256xf32> -> vector<8x256xf32>
    %10 = arith.addf %3, %9 : vector<8x256xf32>
    %cst_5 = arith.constant 0xFF800000 : f32
    %11 = vector.broadcast %cst_5 : f32 to vector<4x256xf32>
    %12 = tpu.concatenate %6, %11 in 0 : vector<4x256xf32>, vector<4x256xf32> -> vector<8x256xf32>
    %13 = arith.maximumf %4, %12 : vector<8x256xf32>
    %c0_6 = arith.constant 0 : index
    %c0_7 = arith.constant 0 : index
    %14 = vector.load %arg5[%c0_6, %c0_7] : memref<8x256xf32, #tpu.memory_space<vmem>>, vector<8x256xf32>
    %15 = arith.addf %14, %10 : vector<8x256xf32>
    %c0_8 = arith.constant 0 : index
    %c0_9 = arith.constant 0 : index
    %16 = vector.load %arg5[%c0_8, %c0_9] : memref<8x256xf32, #tpu.memory_space<vmem>>, vector<8x256xf32>
    tpu.vector_store %arg5[%c0_8, %c0_9], %15 {strides = array<i32>} : memref<8x256xf32, #tpu.memory_space<vmem>>, vector<8x256xf32>,
    %c0_10 = arith.constant 0 : index
    %c0_11 = arith.constant 0 : index
    %17 = vector.load %arg6[%c0_10, %c0_11] : memref<8x256xf32, #tpu.memory_space<vmem>>, vector<8x256xf32>
    %18 = arith.maximumf %17, %13 : vector<8x256xf32>
    %c0_12 = arith.constant 0 : index
    %c0_13 = arith.constant 0 : index
    %19 = vector.load %arg6[%c0_12, %c0_13] : memref<8x256xf32, #tpu.memory_space<vmem>>, vector<8x256xf32>
    tpu.vector_store %arg6[%c0_12, %c0_13], %18 {strides = array<i32>} : memref<8x256xf32, #tpu.memory_space<vmem>>, vector<8x256xf32>,
    %c0_i32_14 = arith.constant 0 : i32
    %20 = arith.cmpi eq, %arg1, %c0_i32_14 : i32
    %21 = arith.extui %20 : i1 to i32
    %c0_i32_15 = arith.constant 0 : i32
    %22 = arith.cmpi ne, %21, %c0_i32_15 : i32
    scf.if %22 {
      %c0_16 = arith.constant 0 : index
      %c0_17 = arith.constant 0 : index
      %23 = vector.load %arg5[%c0_16, %c0_17] : memref<8x256xf32, #tpu.memory_space<vmem>>, vector<8x256xf32>
      %cst_18 = arith.constant dense<0.000000e+00> : vector<256xf32>
      %24 = vector.multi_reduction <add>, %23, %cst_18 [0] : vector<8x256xf32> to vector<256xf32>
      %25 = vector.shape_cast %24 : vector<256xf32> to vector<1x256xf32>
      %cst_19 = arith.constant 2.500000e-01 : f32
      %26 = vector.broadcast %cst_19 : f32 to vector<1x256xf32>
      %27 = arith.mulf %25, %26 : vector<1x256xf32>
      %c0_20 = arith.constant 0 : index
      %c0_21 = arith.constant 0 : index
      %28 = vector.load %arg6[%c0_20, %c0_21] : memref<8x256xf32, #tpu.memory_space<vmem>>, vector<8x256xf32>
      %cst_22 = arith.constant dense<0xFF800000> : vector<256xf32>
      %29 = vector.multi_reduction <maximumf>, %28, %cst_22 [0] : vector<8x256xf32> to vector<256xf32>
      %30 = vector.shape_cast %29 : vector<256xf32> to vector<1x256xf32>
      %cst_23 = arith.constant 0.000000e+00 : f32
      %31 = vector.broadcast %cst_23 : f32 to vector<2x128xf32>
      %c0_24 = arith.constant 0 : index
      %c0_25 = arith.constant 0 : index
      %32 = vector.load %arg7[%c0_24, %c0_25] : memref<2x435xf32, #tpu.memory_space<vmem>>, vector<2x128xf32>
      tpu.vector_store %arg7[%c0_24, %c0_25], %31 {strides = array<i32>} : memref<2x435xf32, #tpu.memory_space<vmem>>, vector<2x128xf32>,
      %cst_26 = arith.constant 0.000000e+00 : f32
      %33 = vector.broadcast %cst_26 : f32 to vector<2x51xf32>
      %c0_27 = arith.constant 0 : index
      %c384 = arith.constant 384 : index
      %34 = vector.load %arg7[%c0_27, %c384] : memref<2x435xf32, #tpu.memory_space<vmem>>, vector<2x51xf32>
      tpu.vector_store %arg7[%c0_27, %c384], %33 {strides = array<i32>} : memref<2x435xf32, #tpu.memory_space<vmem>>, vector<2x51xf32>,
      %c0_28 = arith.constant 0 : index
      %c128 = arith.constant 128 : index
      %35 = vector.load %arg7[%c0_28, %c128] : memref<2x435xf32, #tpu.memory_space<vmem>>, vector<1x256xf32>
      tpu.vector_store %arg7[%c0_28, %c128], %27 {strides = array<i32>} : memref<2x435xf32, #tpu.memory_space<vmem>>, vector<1x256xf32>,
      %c1 = arith.constant 1 : index
      %c128_29 = arith.constant 128 : index
      %36 = vector.load %arg7[%c1, %c128_29] : memref<2x435xf32, #tpu.memory_space<vmem>>, vector<1x256xf32>
      tpu.vector_store %arg7[%c1, %c128_29], %30 {strides = array<i32>} : memref<2x435xf32, #tpu.memory_space<vmem>>, vector<1x256xf32>,
      %37 = tpu.iota {dimensions = array<i32: 1>} : vector<1x256xi32>
      %c16_i32 = arith.constant 16 : i32
      %c0_i32_30 = arith.constant 0 : i32
      %38 = arith.cmpi eq, %c16_i32, %c0_i32_30 : i32
      %c1_i32 = arith.constant 1 : i32
      %39 = arith.select %38, %c1_i32, %c16_i32 : i32
      %40 = vector.broadcast %39 : i32 to vector<1x256xi32>
      %41 = arith.remsi %37, %40 : vector<1x256xi32>
      %c0_i32_31 = arith.constant 0 : i32
      %42 = vector.broadcast %c0_i32_31 : i32 to vector<1x256xi32>
      %43 = arith.cmpi ne, %41, %42 : vector<1x256xi32>
      %c0_i32_32 = arith.constant 0 : i32
      %44 = vector.broadcast %c0_i32_32 : i32 to vector<1x256xi32>
      %45 = arith.cmpi slt, %41, %44 : vector<1x256xi32>
      %c0_i32_33 = arith.constant 0 : i32
      %46 = arith.cmpi slt, %39, %c0_i32_33 : i32
      %47 = vector.broadcast %46 : i1 to vector<1x256xi1>
      %48 = vector.broadcast %47 : vector<1x256xi1> to vector<1x256xi1>
      %49 = arith.xori %45, %48 : vector<1x256xi1>
      %50 = arith.andi %49, %43 : vector<1x256xi1>
      %51 = vector.broadcast %39 : i32 to vector<1x256xi32>
      %52 = arith.addi %41, %51 : vector<1x256xi32>
      %53 = arith.select %50, %52, %41 : vector<1x256xi1>, vector<1x256xi32>
      %cst_34 = arith.constant 0.000000e+00 : f32
      %54 = vector.broadcast %cst_34 : f32 to vector<1x256xf32>
      %cst_35 = arith.constant 0.000000e+00 : f32
      %55 = vector.broadcast %cst_35 : f32 to vector<1x256xf32>
      %c0_36 = arith.constant 0 : index
      %56 = memref.load %arg2[%c0_36] : memref<98xf32, #tpu.memory_space<smem>>
      %c0_37 = arith.constant 0 : index
      %c77 = arith.constant 77 : index
      %57 = vector.load %arg7[%c0_37, %c77] : memref<2x435xf32, #tpu.memory_space<vmem>>, vector<1x256xf32>
      %58 = vector.broadcast %56 : f32 to vector<1x256xf32>
      %59 = arith.mulf %57, %58 : vector<1x256xf32>
      %60 = arith.addf %55, %59 : vector<1x256xf32>
      %c7 = arith.constant 7 : index
      %61 = memref.load %arg2[%c7] : memref<98xf32, #tpu.memory_space<smem>>
      %c0_38 = arith.constant 0 : index
      %c93 = arith.constant 93 : index
      %62 = vector.load %arg7[%c0_38, %c93] : memref<2x435xf32, #tpu.memory_space<vmem>>, vector<1x256xf32>
      %63 = vector.broadcast %61 : f32 to vector<1x256xf32>
      %64 = arith.mulf %62, %63 : vector<1x256xf32>
      %65 = arith.addf %60, %64 : vector<1x256xf32>
      %c14 = arith.constant 14 : index
      %66 = memref.load %arg2[%c14] : memref<98xf32, #tpu.memory_space<smem>>
      %c0_39 = arith.constant 0 : index
      %c109 = arith.constant 109 : index
      %67 = vector.load %arg7[%c0_39, %c109] : memref<2x435xf32, #tpu.memory_space<vmem>>, vector<1x256xf32>
      %68 = vector.broadcast %66 : f32 to vector<1x256xf32>
      %69 = arith.mulf %67, %68 : vector<1x256xf32>
      %70 = arith.addf %65, %69 : vector<1x256xf32>
      %c21 = arith.constant 21 : index
      %71 = memref.load %arg2[%c21] : memref<98xf32, #tpu.memory_space<smem>>
      %c0_40 = arith.constant 0 : index
      %c125 = arith.constant 125 : index
      %72 = vector.load %arg7[%c0_40, %c125] : memref<2x435xf32, #tpu.memory_space<vmem>>, vector<1x256xf32>
      %73 = vector.broadcast %71 : f32 to vector<1x256xf32>
      %74 = arith.mulf %72, %73 : vector<1x256xf32>
      %75 = arith.addf %70, %74 : vector<1x256xf32>
      %c28 = arith.constant 28 : index
      %76 = memref.load %arg2[%c28] : memref<98xf32, #tpu.memory_space<smem>>
      %c0_41 = arith.constant 0 : index
      %c141 = arith.constant 141 : index
      %77 = vector.load %arg7[%c0_41, %c141] : memref<2x435xf32, #tpu.memory_space<vmem>>, vector<1x256xf32>
      %78 = vector.broadcast %76 : f32 to vector<1x256xf32>
      %79 = arith.mulf %77, %78 : vector<1x256xf32>
      %80 = arith.addf %75, %79 : vector<1x256xf32>
      %c35 = arith.constant 35 : index
      %81 = memref.load %arg2[%c35] : memref<98xf32, #tpu.memory_space<smem>>
      %c0_42 = arith.constant 0 : index
      %c157 = arith.constant 157 : index
      %82 = vector.load %arg7[%c0_42, %c157] : memref<2x435xf32, #tpu.memory_space<vmem>>, vector<1x256xf32>
      %83 = vector.broadcast %81 : f32 to vector<1x256xf32>
      %84 = arith.mulf %82, %83 : vector<1x256xf32>
      %85 = arith.addf %80, %84 : vector<1x256xf32>
      %c42 = arith.constant 42 : index
      %86 = memref.load %arg2[%c42] : memref<98xf32, #tpu.memory_space<smem>>
      %c0_43 = arith.constant 0 : index
      %c173 = arith.constant 173 : index
      %87 = vector.load %arg7[%c0_43, %c173] : memref<2x435xf32, #tpu.memory_space<vmem>>, vector<1x256xf32>
      %88 = vector.broadcast %86 : f32 to vector<1x256xf32>
      %89 = arith.mulf %87, %88 : vector<1x256xf32>
      %90 = arith.addf %85, %89 : vector<1x256xf32>
      %c49 = arith.constant 49 : index
      %91 = memref.load %arg2[%c49] : memref<98xf32, #tpu.memory_space<smem>>
      %c1_44 = arith.constant 1 : index
      %c77_45 = arith.constant 77 : index
      %92 = vector.load %arg7[%c1_44, %c77_45] : memref<2x435xf32, #tpu.memory_space<vmem>>, vector<1x256xf32>
      %93 = vector.broadcast %91 : f32 to vector<1x256xf32>
      %94 = arith.mulf %92, %93 : vector<1x256xf32>
      %95 = arith.addf %90, %94 : vector<1x256xf32>
      %c56 = arith.constant 56 : index
      %96 = memref.load %arg2[%c56] : memref<98xf32, #tpu.memory_space<smem>>
      %c1_46 = arith.constant 1 : index
      %c93_47 = arith.constant 93 : index
      %97 = vector.load %arg7[%c1_46, %c93_47] : memref<2x435xf32, #tpu.memory_space<vmem>>, vector<1x256xf32>
      %98 = vector.broadcast %96 : f32 to vector<1x256xf32>
      %99 = arith.mulf %97, %98 : vector<1x256xf32>
      %100 = arith.addf %95, %99 : vector<1x256xf32>
      %c63 = arith.constant 63 : index
      %101 = memref.load %arg2[%c63] : memref<98xf32, #tpu.memory_space<smem>>
      %c1_48 = arith.constant 1 : index
      %c109_49 = arith.constant 109 : index
      %102 = vector.load %arg7[%c1_48, %c109_49] : memref<2x435xf32, #tpu.memory_space<vmem>>, vector<1x256xf32>
      %103 = vector.broadcast %101 : f32 to vector<1x256xf32>
      %104 = arith.mulf %102, %103 : vector<1x256xf32>
      %105 = arith.addf %100, %104 : vector<1x256xf32>
      %c70 = arith.constant 70 : index
      %106 = memref.load %arg2[%c70] : memref<98xf32, #tpu.memory_space<smem>>
      %c1_50 = arith.constant 1 : index
      %c125_51 = arith.constant 125 : index
      %107 = vector.load %arg7[%c1_50, %c125_51] : memref<2x435xf32, #tpu.memory_space<vmem>>, vector<1x256xf32>
      %108 = vector.broadcast %106 : f32 to vector<1x256xf32>
      %109 = arith.mulf %107, %108 : vector<1x256xf32>
      %110 = arith.addf %105, %109 : vector<1x256xf32>
      %c77_52 = arith.constant 77 : index
      %111 = memref.load %arg2[%c77_52] : memref<98xf32, #tpu.memory_space<smem>>
      %c1_53 = arith.constant 1 : index
      %c141_54 = arith.constant 141 : index
      %112 = vector.load %arg7[%c1_53, %c141_54] : memref<2x435xf32, #tpu.memory_space<vmem>>, vector<1x256xf32>
      %113 = vector.broadcast %111 : f32 to vector<1x256xf32>
      %114 = arith.mulf %112, %113 : vector<1x256xf32>
      %115 = arith.addf %110, %114 : vector<1x256xf32>
      %c84 = arith.constant 84 : index
      %116 = memref.load %arg2[%c84] : memref<98xf32, #tpu.memory_space<smem>>
      %c1_55 = arith.constant 1 : index
      %c157_56 = arith.constant 157 : index
      %117 = vector.load %arg7[%c1_55, %c157_56] : memref<2x435xf32, #tpu.memory_space<vmem>>, vector<1x256xf32>
      %118 = vector.broadcast %116 : f32 to vector<1x256xf32>
      %119 = arith.mulf %117, %118 : vector<1x256xf32>
      %120 = arith.addf %115, %119 : vector<1x256xf32>
      %c91 = arith.constant 91 : index
      %121 = memref.load %arg2[%c91] : memref<98xf32, #tpu.memory_space<smem>>
      %c1_57 = arith.constant 1 : index
      %c173_58 = arith.constant 173 : index
      %122 = vector.load %arg7[%c1_57, %c173_58] : memref<2x435xf32, #tpu.memory_space<vmem>>, vector<1x256xf32>
      %123 = vector.broadcast %121 : f32 to vector<1x256xf32>
      %124 = arith.mulf %122, %123 : vector<1x256xf32>
      %125 = arith.addf %120, %124 : vector<1x256xf32>
      %c-3_i32 = arith.constant -3 : i32
      %126 = vector.broadcast %c-3_i32 : i32 to vector<1x256xi32>
      %127 = arith.addi %53, %126 : vector<1x256xi32>
      %c0_i32_59 = arith.constant 0 : i32
      %128 = vector.broadcast %c0_i32_59 : i32 to vector<1x256xi32>
      %129 = arith.cmpi sge, %127, %128 : vector<1x256xi32>
      %c-3_i32_60 = arith.constant -3 : i32
      %130 = vector.broadcast %c-3_i32_60 : i32 to vector<1x256xi32>
      %131 = arith.addi %53, %130 : vector<1x256xi32>
      %c16_i32_61 = arith.constant 16 : i32
      %132 = vector.broadcast %c16_i32_61 : i32 to vector<1x256xi32>
      %133 = arith.cmpi slt, %131, %132 : vector<1x256xi32>
      %134 = arith.andi %129, %133 : vector<1x256xi1>
      %cst_62 = arith.constant 0.000000e+00 : f32
      %135 = vector.broadcast %cst_62 : f32 to vector<1x256xf32>
      %136 = arith.select %134, %125, %135 : vector<1x256xi1>, vector<1x256xf32>
      %137 = arith.addf %54, %136 : vector<1x256xf32>
      %cst_63 = arith.constant 0.000000e+00 : f32
      %138 = vector.broadcast %cst_63 : f32 to vector<1x256xf32>
      %c1_64 = arith.constant 1 : index
      %139 = memref.load %arg2[%c1_64] : memref<98xf32, #tpu.memory_space<smem>>
      %c0_65 = arith.constant 0 : index
      %c78 = arith.constant 78 : index
      %140 = vector.load %arg7[%c0_65, %c78] : memref<2x435xf32, #tpu.memory_space<vmem>>, vector<1x256xf32>
      %141 = vector.broadcast %139 : f32 to vector<1x256xf32>
      %142 = arith.mulf %140, %141 : vector<1x256xf32>
      %143 = arith.addf %138, %142 : vector<1x256xf32>
      %c8 = arith.constant 8 : index
      %144 = memref.load %arg2[%c8] : memref<98xf32, #tpu.memory_space<smem>>
      %c0_66 = arith.constant 0 : index
      %c94 = arith.constant 94 : index
      %145 = vector.load %arg7[%c0_66, %c94] : memref<2x435xf32, #tpu.memory_space<vmem>>, vector<1x256xf32>
      %146 = vector.broadcast %144 : f32 to vector<1x256xf32>
      %147 = arith.mulf %145, %146 : vector<1x256xf32>
      %148 = arith.addf %143, %147 : vector<1x256xf32>
      %c15 = arith.constant 15 : index
      %149 = memref.load %arg2[%c15] : memref<98xf32, #tpu.memory_space<smem>>
      %c0_67 = arith.constant 0 : index
      %c110 = arith.constant 110 : index
      %150 = vector.load %arg7[%c0_67, %c110] : memref<2x435xf32, #tpu.memory_space<vmem>>, vector<1x256xf32>
      %151 = vector.broadcast %149 : f32 to vector<1x256xf32>
      %152 = arith.mulf %150, %151 : vector<1x256xf32>
      %153 = arith.addf %148, %152 : vector<1x256xf32>
      %c22 = arith.constant 22 : index
      %154 = memref.load %arg2[%c22] : memref<98xf32, #tpu.memory_space<smem>>
      %c0_68 = arith.constant 0 : index
      %c126 = arith.constant 126 : index
      %155 = vector.load %arg7[%c0_68, %c126] : memref<2x435xf32, #tpu.memory_space<vmem>>, vector<1x256xf32>
      %156 = vector.broadcast %154 : f32 to vector<1x256xf32>
      %157 = arith.mulf %155, %156 : vector<1x256xf32>
      %158 = arith.addf %153, %157 : vector<1x256xf32>
      %c29 = arith.constant 29 : index
      %159 = memref.load %arg2[%c29] : memref<98xf32, #tpu.memory_space<smem>>
      %c0_69 = arith.constant 0 : index
      %c142 = arith.constant 142 : index
      %160 = vector.load %arg7[%c0_69, %c142] : memref<2x435xf32, #tpu.memory_space<vmem>>, vector<1x256xf32>
      %161 = vector.broadcast %159 : f32 to vector<1x256xf32>
      %162 = arith.mulf %160, %161 : vector<1x256xf32>
      %163 = arith.addf %158, %162 : vector<1x256xf32>
      %c36 = arith.constant 36 : index
      %164 = memref.load %arg2[%c36] : memref<98xf32, #tpu.memory_space<smem>>
      %c0_70 = arith.constant 0 : index
      %c158 = arith.constant 158 : index
      %165 = vector.load %arg7[%c0_70, %c158] : memref<2x435xf32, #tpu.memory_space<vmem>>, vector<1x256xf32>
      %166 = vector.broadcast %164 : f32 to vector<1x256xf32>
      %167 = arith.mulf %165, %166 : vector<1x256xf32>
      %168 = arith.addf %163, %167 : vector<1x256xf32>
      %c43 = arith.constant 43 : index
      %169 = memref.load %arg2[%c43] : memref<98xf32, #tpu.memory_space<smem>>
      %c0_71 = arith.constant 0 : index
      %c174 = arith.constant 174 : index
      %170 = vector.load %arg7[%c0_71, %c174] : memref<2x435xf32, #tpu.memory_space<vmem>>, vector<1x256xf32>
      %171 = vector.broadcast %169 : f32 to vector<1x256xf32>
      %172 = arith.mulf %170, %171 : vector<1x256xf32>
      %173 = arith.addf %168, %172 : vector<1x256xf32>
      %c50 = arith.constant 50 : index
      %174 = memref.load %arg2[%c50] : memref<98xf32, #tpu.memory_space<smem>>
      %c1_72 = arith.constant 1 : index
      %c78_73 = arith.constant 78 : index
      %175 = vector.load %arg7[%c1_72, %c78_73] : memref<2x435xf32, #tpu.memory_space<vmem>>, vector<1x256xf32>
      %176 = vector.broadcast %174 : f32 to vector<1x256xf32>
      %177 = arith.mulf %175, %176 : vector<1x256xf32>
      %178 = arith.addf %173, %177 : vector<1x256xf32>
      %c57 = arith.constant 57 : index
      %179 = memref.load %arg2[%c57] : memref<98xf32, #tpu.memory_space<smem>>
      %c1_74 = arith.constant 1 : index
      %c94_75 = arith.constant 94 : index
      %180 = vector.load %arg7[%c1_74, %c94_75] : memref<2x435xf32, #tpu.memory_space<vmem>>, vector<1x256xf32>
      %181 = vector.broadcast %179 : f32 to vector<1x256xf32>
      %182 = arith.mulf %180, %181 : vector<1x256xf32>
      %183 = arith.addf %178, %182 : vector<1x256xf32>
      %c64 = arith.constant 64 : index
      %184 = memref.load %arg2[%c64] : memref<98xf32, #tpu.memory_space<smem>>
      %c1_76 = arith.constant 1 : index
      %c110_77 = arith.constant 110 : index
      %185 = vector.load %arg7[%c1_76, %c110_77] : memref<2x435xf32, #tpu.memory_space<vmem>>, vector<1x256xf32>
      %186 = vector.broadcast %184 : f32 to vector<1x256xf32>
      %187 = arith.mulf %185, %186 : vector<1x256xf32>
      %188 = arith.addf %183, %187 : vector<1x256xf32>
      %c71 = arith.constant 71 : index
      %189 = memref.load %arg2[%c71] : memref<98xf32, #tpu.memory_space<smem>>
      %c1_78 = arith.constant 1 : index
      %c126_79 = arith.constant 126 : index
      %190 = vector.load %arg7[%c1_78, %c126_79] : memref<2x435xf32, #tpu.memory_space<vmem>>, vector<1x256xf32>
      %191 = vector.broadcast %189 : f32 to vector<1x256xf32>
      %192 = arith.mulf %190, %191 : vector<1x256xf32>
      %193 = arith.addf %188, %192 : vector<1x256xf32>
      %c78_80 = arith.constant 78 : index
      %194 = memref.load %arg2[%c78_80] : memref<98xf32, #tpu.memory_space<smem>>
      %c1_81 = arith.constant 1 : index
      %c142_82 = arith.constant 142 : index
      %195 = vector.load %arg7[%c1_81, %c142_82] : memref<2x435xf32, #tpu.memory_space<vmem>>, vector<1x256xf32>
      %196 = vector.broadcast %194 : f32 to vector<1x256xf32>
      %197 = arith.mulf %195, %196 : vector<1x256xf32>
      %198 = arith.addf %193, %197 : vector<1x256xf32>
      %c85 = arith.constant 85 : index
      %199 = memref.load %arg2[%c85] : memref<98xf32, #tpu.memory_space<smem>>
      %c1_83 = arith.constant 1 : index
      %c158_84 = arith.constant 158 : index
      %200 = vector.load %arg7[%c1_83, %c158_84] : memref<2x435xf32, #tpu.memory_space<vmem>>, vector<1x256xf32>
      %201 = vector.broadcast %199 : f32 to vector<1x256xf32>
      %202 = arith.mulf %200, %201 : vector<1x256xf32>
      %203 = arith.addf %198, %202 : vector<1x256xf32>
      %c92 = arith.constant 92 : index
      %204 = memref.load %arg2[%c92] : memref<98xf32, #tpu.memory_space<smem>>
      %c1_85 = arith.constant 1 : index
      %c174_86 = arith.constant 174 : index
      %205 = vector.load %arg7[%c1_85, %c174_86] : memref<2x435xf32, #tpu.memory_space<vmem>>, vector<1x256xf32>
      %206 = vector.broadcast %204 : f32 to vector<1x256xf32>
      %207 = arith.mulf %205, %206 : vector<1x256xf32>
      %208 = arith.addf %203, %207 : vector<1x256xf32>
      %c-2_i32 = arith.constant -2 : i32
      %209 = vector.broadcast %c-2_i32 : i32 to vector<1x256xi32>
      %210 = arith.addi %53, %209 : vector<1x256xi32>
      %c0_i32_87 = arith.constant 0 : i32
      %211 = vector.broadcast %c0_i32_87 : i32 to vector<1x256xi32>
      %212 = arith.cmpi sge, %210, %211 : vector<1x256xi32>
      %c-2_i32_88 = arith.constant -2 : i32
      %213 = vector.broadcast %c-2_i32_88 : i32 to vector<1x256xi32>
      %214 = arith.addi %53, %213 : vector<1x256xi32>
      %c16_i32_89 = arith.constant 16 : i32
      %215 = vector.broadcast %c16_i32_89 : i32 to vector<1x256xi32>
      %216 = arith.cmpi slt, %214, %215 : vector<1x256xi32>
      %217 = arith.andi %212, %216 : vector<1x256xi1>
      %cst_90 = arith.constant 0.000000e+00 : f32
      %218 = vector.broadcast %cst_90 : f32 to vector<1x256xf32>
      %219 = arith.select %217, %208, %218 : vector<1x256xi1>, vector<1x256xf32>
      %220 = arith.addf %137, %219 : vector<1x256xf32>
      %cst_91 = arith.constant 0.000000e+00 : f32
      %221 = vector.broadcast %cst_91 : f32 to vector<1x256xf32>
      %c2 = arith.constant 2 : index
      %222 = memref.load %arg2[%c2] : memref<98xf32, #tpu.memory_space<smem>>
      %c0_92 = arith.constant 0 : index
      %c79 = arith.constant 79 : index
      %223 = vector.load %arg7[%c0_92, %c79] : memref<2x435xf32, #tpu.memory_space<vmem>>, vector<1x256xf32>
      %224 = vector.broadcast %222 : f32 to vector<1x256xf32>
      %225 = arith.mulf %223, %224 : vector<1x256xf32>
      %226 = arith.addf %221, %225 : vector<1x256xf32>
      %c9 = arith.constant 9 : index
      %227 = memref.load %arg2[%c9] : memref<98xf32, #tpu.memory_space<smem>>
      %c0_93 = arith.constant 0 : index
      %c95 = arith.constant 95 : index
      %228 = vector.load %arg7[%c0_93, %c95] : memref<2x435xf32, #tpu.memory_space<vmem>>, vector<1x256xf32>
      %229 = vector.broadcast %227 : f32 to vector<1x256xf32>
      %230 = arith.mulf %228, %229 : vector<1x256xf32>
      %231 = arith.addf %226, %230 : vector<1x256xf32>
      %c16 = arith.constant 16 : index
      %232 = memref.load %arg2[%c16] : memref<98xf32, #tpu.memory_space<smem>>
      %c0_94 = arith.constant 0 : index
      %c111 = arith.constant 111 : index
      %233 = vector.load %arg7[%c0_94, %c111] : memref<2x435xf32, #tpu.memory_space<vmem>>, vector<1x256xf32>
      %234 = vector.broadcast %232 : f32 to vector<1x256xf32>
      %235 = arith.mulf %233, %234 : vector<1x256xf32>
      %236 = arith.addf %231, %235 : vector<1x256xf32>
      %c23 = arith.constant 23 : index
      %237 = memref.load %arg2[%c23] : memref<98xf32, #tpu.memory_space<smem>>
      %c0_95 = arith.constant 0 : index
      %c127 = arith.constant 127 : index
      %238 = vector.load %arg7[%c0_95, %c127] : memref<2x435xf32, #tpu.memory_space<vmem>>, vector<1x256xf32>
      %239 = vector.broadcast %237 : f32 to vector<1x256xf32>
      %240 = arith.mulf %238, %239 : vector<1x256xf32>
      %241 = arith.addf %236, %240 : vector<1x256xf32>
      %c30 = arith.constant 30 : index
      %242 = memref.load %arg2[%c30] : memref<98xf32, #tpu.memory_space<smem>>
      %c0_96 = arith.constant 0 : index
      %c143 = arith.constant 143 : index
      %243 = vector.load %arg7[%c0_96, %c143] : memref<2x435xf32, #tpu.memory_space<vmem>>, vector<1x256xf32>
      %244 = vector.broadcast %242 : f32 to vector<1x256xf32>
      %245 = arith.mulf %243, %244 : vector<1x256xf32>
      %246 = arith.addf %241, %245 : vector<1x256xf32>
      %c37 = arith.constant 37 : index
      %247 = memref.load %arg2[%c37] : memref<98xf32, #tpu.memory_space<smem>>
      %c0_97 = arith.constant 0 : index
      %c159 = arith.constant 159 : index
      %248 = vector.load %arg7[%c0_97, %c159] : memref<2x435xf32, #tpu.memory_space<vmem>>, vector<1x256xf32>
      %249 = vector.broadcast %247 : f32 to vector<1x256xf32>
      %250 = arith.mulf %248, %249 : vector<1x256xf32>
      %251 = arith.addf %246, %250 : vector<1x256xf32>
      %c44 = arith.constant 44 : index
      %252 = memref.load %arg2[%c44] : memref<98xf32, #tpu.memory_space<smem>>
      %c0_98 = arith.constant 0 : index
      %c175 = arith.constant 175 : index
      %253 = vector.load %arg7[%c0_98, %c175] : memref<2x435xf32, #tpu.memory_space<vmem>>, vector<1x256xf32>
      %254 = vector.broadcast %252 : f32 to vector<1x256xf32>
      %255 = arith.mulf %253, %254 : vector<1x256xf32>
      %256 = arith.addf %251, %255 : vector<1x256xf32>
      %c51 = arith.constant 51 : index
      %257 = memref.load %arg2[%c51] : memref<98xf32, #tpu.memory_space<smem>>
      %c1_99 = arith.constant 1 : index
      %c79_100 = arith.constant 79 : index
      %258 = vector.load %arg7[%c1_99, %c79_100] : memref<2x435xf32, #tpu.memory_space<vmem>>, vector<1x256xf32>
      %259 = vector.broadcast %257 : f32 to vector<1x256xf32>
      %260 = arith.mulf %258, %259 : vector<1x256xf32>
      %261 = arith.addf %256, %260 : vector<1x256xf32>
      %c58 = arith.constant 58 : index
      %262 = memref.load %arg2[%c58] : memref<98xf32, #tpu.memory_space<smem>>
      %c1_101 = arith.constant 1 : index
      %c95_102 = arith.constant 95 : index
      %263 = vector.load %arg7[%c1_101, %c95_102] : memref<2x435xf32, #tpu.memory_space<vmem>>, vector<1x256xf32>
      %264 = vector.broadcast %262 : f32 to vector<1x256xf32>
      %265 = arith.mulf %263, %264 : vector<1x256xf32>
      %266 = arith.addf %261, %265 : vector<1x256xf32>
      %c65 = arith.constant 65 : index
      %267 = memref.load %arg2[%c65] : memref<98xf32, #tpu.memory_space<smem>>
      %c1_103 = arith.constant 1 : index
      %c111_104 = arith.constant 111 : index
      %268 = vector.load %arg7[%c1_103, %c111_104] : memref<2x435xf32, #tpu.memory_space<vmem>>, vector<1x256xf32>
      %269 = vector.broadcast %267 : f32 to vector<1x256xf32>
      %270 = arith.mulf %268, %269 : vector<1x256xf32>
      %271 = arith.addf %266, %270 : vector<1x256xf32>
      %c72 = arith.constant 72 : index
      %272 = memref.load %arg2[%c72] : memref<98xf32, #tpu.memory_space<smem>>
      %c1_105 = arith.constant 1 : index
      %c127_106 = arith.constant 127 : index
      %273 = vector.load %arg7[%c1_105, %c127_106] : memref<2x435xf32, #tpu.memory_space<vmem>>, vector<1x256xf32>
      %274 = vector.broadcast %272 : f32 to vector<1x256xf32>
      %275 = arith.mulf %273, %274 : vector<1x256xf32>
      %276 = arith.addf %271, %275 : vector<1x256xf32>
      %c79_107 = arith.constant 79 : index
      %277 = memref.load %arg2[%c79_107] : memref<98xf32, #tpu.memory_space<smem>>
      %c1_108 = arith.constant 1 : index
      %c143_109 = arith.constant 143 : index
      %278 = vector.load %arg7[%c1_108, %c143_109] : memref<2x435xf32, #tpu.memory_space<vmem>>, vector<1x256xf32>
      %279 = vector.broadcast %277 : f32 to vector<1x256xf32>
      %280 = arith.mulf %278, %279 : vector<1x256xf32>
      %281 = arith.addf %276, %280 : vector<1x256xf32>
      %c86 = arith.constant 86 : index
      %282 = memref.load %arg2[%c86] : memref<98xf32, #tpu.memory_space<smem>>
      %c1_110 = arith.constant 1 : index
      %c159_111 = arith.constant 159 : index
      %283 = vector.load %arg7[%c1_110, %c159_111] : memref<2x435xf32, #tpu.memory_space<vmem>>, vector<1x256xf32>
      %284 = vector.broadcast %282 : f32 to vector<1x256xf32>
      %285 = arith.mulf %283, %284 : vector<1x256xf32>
      %286 = arith.addf %281, %285 : vector<1x256xf32>
      %c93_112 = arith.constant 93 : index
      %287 = memref.load %arg2[%c93_112] : memref<98xf32, #tpu.memory_space<smem>>
      %c1_113 = arith.constant 1 : index
      %c175_114 = arith.constant 175 : index
      %288 = vector.load %arg7[%c1_113, %c175_114] : memref<2x435xf32, #tpu.memory_space<vmem>>, vector<1x256xf32>
      %289 = vector.broadcast %287 : f32 to vector<1x256xf32>
      %290 = arith.mulf %288, %289 : vector<1x256xf32>
      %291 = arith.addf %286, %290 : vector<1x256xf32>
      %c-1_i32 = arith.constant -1 : i32
      %292 = vector.broadcast %c-1_i32 : i32 to vector<1x256xi32>
      %293 = arith.addi %53, %292 : vector<1x256xi32>
      %c0_i32_115 = arith.constant 0 : i32
      %294 = vector.broadcast %c0_i32_115 : i32 to vector<1x256xi32>
      %295 = arith.cmpi sge, %293, %294 : vector<1x256xi32>
      %c-1_i32_116 = arith.constant -1 : i32
      %296 = vector.broadcast %c-1_i32_116 : i32 to vector<1x256xi32>
      %297 = arith.addi %53, %296 : vector<1x256xi32>
      %c16_i32_117 = arith.constant 16 : i32
      %298 = vector.broadcast %c16_i32_117 : i32 to vector<1x256xi32>
      %299 = arith.cmpi slt, %297, %298 : vector<1x256xi32>
      %300 = arith.andi %295, %299 : vector<1x256xi1>
      %cst_118 = arith.constant 0.000000e+00 : f32
      %301 = vector.broadcast %cst_118 : f32 to vector<1x256xf32>
      %302 = arith.select %300, %291, %301 : vector<1x256xi1>, vector<1x256xf32>
      %303 = arith.addf %220, %302 : vector<1x256xf32>
      %cst_119 = arith.constant 0.000000e+00 : f32
      %304 = vector.broadcast %cst_119 : f32 to vector<1x256xf32>
      %c3 = arith.constant 3 : index
      %305 = memref.load %arg2[%c3] : memref<98xf32, #tpu.memory_space<smem>>
      %c0_120 = arith.constant 0 : index
      %c80 = arith.constant 80 : index
      %306 = vector.load %arg7[%c0_120, %c80] : memref<2x435xf32, #tpu.memory_space<vmem>>, vector<1x256xf32>
      %307 = vector.broadcast %305 : f32 to vector<1x256xf32>
      %308 = arith.mulf %306, %307 : vector<1x256xf32>
      %309 = arith.addf %304, %308 : vector<1x256xf32>
      %c10 = arith.constant 10 : index
      %310 = memref.load %arg2[%c10] : memref<98xf32, #tpu.memory_space<smem>>
      %c0_121 = arith.constant 0 : index
      %c96 = arith.constant 96 : index
      %311 = vector.load %arg7[%c0_121, %c96] : memref<2x435xf32, #tpu.memory_space<vmem>>, vector<1x256xf32>
      %312 = vector.broadcast %310 : f32 to vector<1x256xf32>
      %313 = arith.mulf %311, %312 : vector<1x256xf32>
      %314 = arith.addf %309, %313 : vector<1x256xf32>
      %c17 = arith.constant 17 : index
      %315 = memref.load %arg2[%c17] : memref<98xf32, #tpu.memory_space<smem>>
      %c0_122 = arith.constant 0 : index
      %c112 = arith.constant 112 : index
      %316 = vector.load %arg7[%c0_122, %c112] : memref<2x435xf32, #tpu.memory_space<vmem>>, vector<1x256xf32>
      %317 = vector.broadcast %315 : f32 to vector<1x256xf32>
      %318 = arith.mulf %316, %317 : vector<1x256xf32>
      %319 = arith.addf %314, %318 : vector<1x256xf32>
      %c24 = arith.constant 24 : index
      %320 = memref.load %arg2[%c24] : memref<98xf32, #tpu.memory_space<smem>>
      %c0_123 = arith.constant 0 : index
      %c128_124 = arith.constant 128 : index
      %321 = vector.load %arg7[%c0_123, %c128_124] : memref<2x435xf32, #tpu.memory_space<vmem>>, vector<1x256xf32>
      %322 = vector.broadcast %320 : f32 to vector<1x256xf32>
      %323 = arith.mulf %321, %322 : vector<1x256xf32>
      %324 = arith.addf %319, %323 : vector<1x256xf32>
      %c31 = arith.constant 31 : index
      %325 = memref.load %arg2[%c31] : memref<98xf32, #tpu.memory_space<smem>>
      %c0_125 = arith.constant 0 : index
      %c144 = arith.constant 144 : index
      %326 = vector.load %arg7[%c0_125, %c144] : memref<2x435xf32, #tpu.memory_space<vmem>>, vector<1x256xf32>
      %327 = vector.broadcast %325 : f32 to vector<1x256xf32>
      %328 = arith.mulf %326, %327 : vector<1x256xf32>
      %329 = arith.addf %324, %328 : vector<1x256xf32>
      %c38 = arith.constant 38 : index
      %330 = memref.load %arg2[%c38] : memref<98xf32, #tpu.memory_space<smem>>
      %c0_126 = arith.constant 0 : index
      %c160 = arith.constant 160 : index
      %331 = vector.load %arg7[%c0_126, %c160] : memref<2x435xf32, #tpu.memory_space<vmem>>, vector<1x256xf32>
      %332 = vector.broadcast %330 : f32 to vector<1x256xf32>
      %333 = arith.mulf %331, %332 : vector<1x256xf32>
      %334 = arith.addf %329, %333 : vector<1x256xf32>
      %c45 = arith.constant 45 : index
      %335 = memref.load %arg2[%c45] : memref<98xf32, #tpu.memory_space<smem>>
      %c0_127 = arith.constant 0 : index
      %c176 = arith.constant 176 : index
      %336 = vector.load %arg7[%c0_127, %c176] : memref<2x435xf32, #tpu.memory_space<vmem>>, vector<1x256xf32>
      %337 = vector.broadcast %335 : f32 to vector<1x256xf32>
      %338 = arith.mulf %336, %337 : vector<1x256xf32>
      %339 = arith.addf %334, %338 : vector<1x256xf32>
      %c52 = arith.constant 52 : index
      %340 = memref.load %arg2[%c52] : memref<98xf32, #tpu.memory_space<smem>>
      %c1_128 = arith.constant 1 : index
      %c80_129 = arith.constant 80 : index
      %341 = vector.load %arg7[%c1_128, %c80_129] : memref<2x435xf32, #tpu.memory_space<vmem>>, vector<1x256xf32>
      %342 = vector.broadcast %340 : f32 to vector<1x256xf32>
      %343 = arith.mulf %341, %342 : vector<1x256xf32>
      %344 = arith.addf %339, %343 : vector<1x256xf32>
      %c59 = arith.constant 59 : index
      %345 = memref.load %arg2[%c59] : memref<98xf32, #tpu.memory_space<smem>>
      %c1_130 = arith.constant 1 : index
      %c96_131 = arith.constant 96 : index
      %346 = vector.load %arg7[%c1_130, %c96_131] : memref<2x435xf32, #tpu.memory_space<vmem>>, vector<1x256xf32>
      %347 = vector.broadcast %345 : f32 to vector<1x256xf32>
      %348 = arith.mulf %346, %347 : vector<1x256xf32>
      %349 = arith.addf %344, %348 : vector<1x256xf32>
      %c66 = arith.constant 66 : index
      %350 = memref.load %arg2[%c66] : memref<98xf32, #tpu.memory_space<smem>>
      %c1_132 = arith.constant 1 : index
      %c112_133 = arith.constant 112 : index
      %351 = vector.load %arg7[%c1_132, %c112_133] : memref<2x435xf32, #tpu.memory_space<vmem>>, vector<1x256xf32>
      %352 = vector.broadcast %350 : f32 to vector<1x256xf32>
      %353 = arith.mulf %351, %352 : vector<1x256xf32>
      %354 = arith.addf %349, %353 : vector<1x256xf32>
      %c73 = arith.constant 73 : index
      %355 = memref.load %arg2[%c73] : memref<98xf32, #tpu.memory_space<smem>>
      %c1_134 = arith.constant 1 : index
      %c128_135 = arith.constant 128 : index
      %356 = vector.load %arg7[%c1_134, %c128_135] : memref<2x435xf32, #tpu.memory_space<vmem>>, vector<1x256xf32>
      %357 = vector.broadcast %355 : f32 to vector<1x256xf32>
      %358 = arith.mulf %356, %357 : vector<1x256xf32>
      %359 = arith.addf %354, %358 : vector<1x256xf32>
      %c80_136 = arith.constant 80 : index
      %360 = memref.load %arg2[%c80_136] : memref<98xf32, #tpu.memory_space<smem>>
      %c1_137 = arith.constant 1 : index
      %c144_138 = arith.constant 144 : index
      %361 = vector.load %arg7[%c1_137, %c144_138] : memref<2x435xf32, #tpu.memory_space<vmem>>, vector<1x256xf32>
      %362 = vector.broadcast %360 : f32 to vector<1x256xf32>
      %363 = arith.mulf %361, %362 : vector<1x256xf32>
      %364 = arith.addf %359, %363 : vector<1x256xf32>
      %c87 = arith.constant 87 : index
      %365 = memref.load %arg2[%c87] : memref<98xf32, #tpu.memory_space<smem>>
      %c1_139 = arith.constant 1 : index
      %c160_140 = arith.constant 160 : index
      %366 = vector.load %arg7[%c1_139, %c160_140] : memref<2x435xf32, #tpu.memory_space<vmem>>, vector<1x256xf32>
      %367 = vector.broadcast %365 : f32 to vector<1x256xf32>
      %368 = arith.mulf %366, %367 : vector<1x256xf32>
      %369 = arith.addf %364, %368 : vector<1x256xf32>
      %c94_141 = arith.constant 94 : index
      %370 = memref.load %arg2[%c94_141] : memref<98xf32, #tpu.memory_space<smem>>
      %c1_142 = arith.constant 1 : index
      %c176_143 = arith.constant 176 : index
      %371 = vector.load %arg7[%c1_142, %c176_143] : memref<2x435xf32, #tpu.memory_space<vmem>>, vector<1x256xf32>
      %372 = vector.broadcast %370 : f32 to vector<1x256xf32>
      %373 = arith.mulf %371, %372 : vector<1x256xf32>
      %374 = arith.addf %369, %373 : vector<1x256xf32>
      %375 = arith.addf %303, %374 : vector<1x256xf32>
      %cst_144 = arith.constant 0.000000e+00 : f32
      %376 = vector.broadcast %cst_144 : f32 to vector<1x256xf32>
      %c4 = arith.constant 4 : index
      %377 = memref.load %arg2[%c4] : memref<98xf32, #tpu.memory_space<smem>>
      %c0_145 = arith.constant 0 : index
      %c81 = arith.constant 81 : index
      %378 = vector.load %arg7[%c0_145, %c81] : memref<2x435xf32, #tpu.memory_space<vmem>>, vector<1x256xf32>
      %379 = vector.broadcast %377 : f32 to vector<1x256xf32>
      %380 = arith.mulf %378, %379 : vector<1x256xf32>
      %381 = arith.addf %376, %380 : vector<1x256xf32>
      %c11 = arith.constant 11 : index
      %382 = memref.load %arg2[%c11] : memref<98xf32, #tpu.memory_space<smem>>
      %c0_146 = arith.constant 0 : index
      %c97 = arith.constant 97 : index
      %383 = vector.load %arg7[%c0_146, %c97] : memref<2x435xf32, #tpu.memory_space<vmem>>, vector<1x256xf32>
      %384 = vector.broadcast %382 : f32 to vector<1x256xf32>
      %385 = arith.mulf %383, %384 : vector<1x256xf32>
      %386 = arith.addf %381, %385 : vector<1x256xf32>
      %c18 = arith.constant 18 : index
      %387 = memref.load %arg2[%c18] : memref<98xf32, #tpu.memory_space<smem>>
      %c0_147 = arith.constant 0 : index
      %c113 = arith.constant 113 : index
      %388 = vector.load %arg7[%c0_147, %c113] : memref<2x435xf32, #tpu.memory_space<vmem>>, vector<1x256xf32>
      %389 = vector.broadcast %387 : f32 to vector<1x256xf32>
      %390 = arith.mulf %388, %389 : vector<1x256xf32>
      %391 = arith.addf %386, %390 : vector<1x256xf32>
      %c25 = arith.constant 25 : index
      %392 = memref.load %arg2[%c25] : memref<98xf32, #tpu.memory_space<smem>>
      %c0_148 = arith.constant 0 : index
      %c129 = arith.constant 129 : index
      %393 = vector.load %arg7[%c0_148, %c129] : memref<2x435xf32, #tpu.memory_space<vmem>>, vector<1x256xf32>
      %394 = vector.broadcast %392 : f32 to vector<1x256xf32>
      %395 = arith.mulf %393, %394 : vector<1x256xf32>
      %396 = arith.addf %391, %395 : vector<1x256xf32>
      %c32 = arith.constant 32 : index
      %397 = memref.load %arg2[%c32] : memref<98xf32, #tpu.memory_space<smem>>
      %c0_149 = arith.constant 0 : index
      %c145 = arith.constant 145 : index
      %398 = vector.load %arg7[%c0_149, %c145] : memref<2x435xf32, #tpu.memory_space<vmem>>, vector<1x256xf32>
      %399 = vector.broadcast %397 : f32 to vector<1x256xf32>
      %400 = arith.mulf %398, %399 : vector<1x256xf32>
      %401 = arith.addf %396, %400 : vector<1x256xf32>
      %c39 = arith.constant 39 : index
      %402 = memref.load %arg2[%c39] : memref<98xf32, #tpu.memory_space<smem>>
      %c0_150 = arith.constant 0 : index
      %c161 = arith.constant 161 : index
      %403 = vector.load %arg7[%c0_150, %c161] : memref<2x435xf32, #tpu.memory_space<vmem>>, vector<1x256xf32>
      %404 = vector.broadcast %402 : f32 to vector<1x256xf32>
      %405 = arith.mulf %403, %404 : vector<1x256xf32>
      %406 = arith.addf %401, %405 : vector<1x256xf32>
      %c46 = arith.constant 46 : index
      %407 = memref.load %arg2[%c46] : memref<98xf32, #tpu.memory_space<smem>>
      %c0_151 = arith.constant 0 : index
      %c177 = arith.constant 177 : index
      %408 = vector.load %arg7[%c0_151, %c177] : memref<2x435xf32, #tpu.memory_space<vmem>>, vector<1x256xf32>
      %409 = vector.broadcast %407 : f32 to vector<1x256xf32>
      %410 = arith.mulf %408, %409 : vector<1x256xf32>
      %411 = arith.addf %406, %410 : vector<1x256xf32>
      %c53 = arith.constant 53 : index
      %412 = memref.load %arg2[%c53] : memref<98xf32, #tpu.memory_space<smem>>
      %c1_152 = arith.constant 1 : index
      %c81_153 = arith.constant 81 : index
      %413 = vector.load %arg7[%c1_152, %c81_153] : memref<2x435xf32, #tpu.memory_space<vmem>>, vector<1x256xf32>
      %414 = vector.broadcast %412 : f32 to vector<1x256xf32>
      %415 = arith.mulf %413, %414 : vector<1x256xf32>
      %416 = arith.addf %411, %415 : vector<1x256xf32>
      %c60 = arith.constant 60 : index
      %417 = memref.load %arg2[%c60] : memref<98xf32, #tpu.memory_space<smem>>
      %c1_154 = arith.constant 1 : index
      %c97_155 = arith.constant 97 : index
      %418 = vector.load %arg7[%c1_154, %c97_155] : memref<2x435xf32, #tpu.memory_space<vmem>>, vector<1x256xf32>
      %419 = vector.broadcast %417 : f32 to vector<1x256xf32>
      %420 = arith.mulf %418, %419 : vector<1x256xf32>
      %421 = arith.addf %416, %420 : vector<1x256xf32>
      %c67 = arith.constant 67 : index
      %422 = memref.load %arg2[%c67] : memref<98xf32, #tpu.memory_space<smem>>
      %c1_156 = arith.constant 1 : index
      %c113_157 = arith.constant 113 : index
      %423 = vector.load %arg7[%c1_156, %c113_157] : memref<2x435xf32, #tpu.memory_space<vmem>>, vector<1x256xf32>
      %424 = vector.broadcast %422 : f32 to vector<1x256xf32>
      %425 = arith.mulf %423, %424 : vector<1x256xf32>
      %426 = arith.addf %421, %425 : vector<1x256xf32>
      %c74 = arith.constant 74 : index
      %427 = memref.load %arg2[%c74] : memref<98xf32, #tpu.memory_space<smem>>
      %c1_158 = arith.constant 1 : index
      %c129_159 = arith.constant 129 : index
      %428 = vector.load %arg7[%c1_158, %c129_159] : memref<2x435xf32, #tpu.memory_space<vmem>>, vector<1x256xf32>
      %429 = vector.broadcast %427 : f32 to vector<1x256xf32>
      %430 = arith.mulf %428, %429 : vector<1x256xf32>
      %431 = arith.addf %426, %430 : vector<1x256xf32>
      %c81_160 = arith.constant 81 : index
      %432 = memref.load %arg2[%c81_160] : memref<98xf32, #tpu.memory_space<smem>>
      %c1_161 = arith.constant 1 : index
      %c145_162 = arith.constant 145 : index
      %433 = vector.load %arg7[%c1_161, %c145_162] : memref<2x435xf32, #tpu.memory_space<vmem>>, vector<1x256xf32>
      %434 = vector.broadcast %432 : f32 to vector<1x256xf32>
      %435 = arith.mulf %433, %434 : vector<1x256xf32>
      %436 = arith.addf %431, %435 : vector<1x256xf32>
      %c88 = arith.constant 88 : index
      %437 = memref.load %arg2[%c88] : memref<98xf32, #tpu.memory_space<smem>>
      %c1_163 = arith.constant 1 : index
      %c161_164 = arith.constant 161 : index
      %438 = vector.load %arg7[%c1_163, %c161_164] : memref<2x435xf32, #tpu.memory_space<vmem>>, vector<1x256xf32>
      %439 = vector.broadcast %437 : f32 to vector<1x256xf32>
      %440 = arith.mulf %438, %439 : vector<1x256xf32>
      %441 = arith.addf %436, %440 : vector<1x256xf32>
      %c95_165 = arith.constant 95 : index
      %442 = memref.load %arg2[%c95_165] : memref<98xf32, #tpu.memory_space<smem>>
      %c1_166 = arith.constant 1 : index
      %c177_167 = arith.constant 177 : index
      %443 = vector.load %arg7[%c1_166, %c177_167] : memref<2x435xf32, #tpu.memory_space<vmem>>, vector<1x256xf32>
      %444 = vector.broadcast %442 : f32 to vector<1x256xf32>
      %445 = arith.mulf %443, %444 : vector<1x256xf32>
      %446 = arith.addf %441, %445 : vector<1x256xf32>
      %c1_i32_168 = arith.constant 1 : i32
      %447 = vector.broadcast %c1_i32_168 : i32 to vector<1x256xi32>
      %448 = arith.addi %53, %447 : vector<1x256xi32>
      %c0_i32_169 = arith.constant 0 : i32
      %449 = vector.broadcast %c0_i32_169 : i32 to vector<1x256xi32>
      %450 = arith.cmpi sge, %448, %449 : vector<1x256xi32>
      %c1_i32_170 = arith.constant 1 : i32
      %451 = vector.broadcast %c1_i32_170 : i32 to vector<1x256xi32>
      %452 = arith.addi %53, %451 : vector<1x256xi32>
      %c16_i32_171 = arith.constant 16 : i32
      %453 = vector.broadcast %c16_i32_171 : i32 to vector<1x256xi32>
      %454 = arith.cmpi slt, %452, %453 : vector<1x256xi32>
      %455 = arith.andi %450, %454 : vector<1x256xi1>
      %cst_172 = arith.constant 0.000000e+00 : f32
      %456 = vector.broadcast %cst_172 : f32 to vector<1x256xf32>
      %457 = arith.select %455, %446, %456 : vector<1x256xi1>, vector<1x256xf32>
      %458 = arith.addf %375, %457 : vector<1x256xf32>
      %cst_173 = arith.constant 0.000000e+00 : f32
      %459 = vector.broadcast %cst_173 : f32 to vector<1x256xf32>
      %c5 = arith.constant 5 : index
      %460 = memref.load %arg2[%c5] : memref<98xf32, #tpu.memory_space<smem>>
      %c0_174 = arith.constant 0 : index
      %c82 = arith.constant 82 : index
      %461 = vector.load %arg7[%c0_174, %c82] : memref<2x435xf32, #tpu.memory_space<vmem>>, vector<1x256xf32>
      %462 = vector.broadcast %460 : f32 to vector<1x256xf32>
      %463 = arith.mulf %461, %462 : vector<1x256xf32>
      %464 = arith.addf %459, %463 : vector<1x256xf32>
      %c12 = arith.constant 12 : index
      %465 = memref.load %arg2[%c12] : memref<98xf32, #tpu.memory_space<smem>>
      %c0_175 = arith.constant 0 : index
      %c98 = arith.constant 98 : index
      %466 = vector.load %arg7[%c0_175, %c98] : memref<2x435xf32, #tpu.memory_space<vmem>>, vector<1x256xf32>
      %467 = vector.broadcast %465 : f32 to vector<1x256xf32>
      %468 = arith.mulf %466, %467 : vector<1x256xf32>
      %469 = arith.addf %464, %468 : vector<1x256xf32>
      %c19 = arith.constant 19 : index
      %470 = memref.load %arg2[%c19] : memref<98xf32, #tpu.memory_space<smem>>
      %c0_176 = arith.constant 0 : index
      %c114 = arith.constant 114 : index
      %471 = vector.load %arg7[%c0_176, %c114] : memref<2x435xf32, #tpu.memory_space<vmem>>, vector<1x256xf32>
      %472 = vector.broadcast %470 : f32 to vector<1x256xf32>
      %473 = arith.mulf %471, %472 : vector<1x256xf32>
      %474 = arith.addf %469, %473 : vector<1x256xf32>
      %c26 = arith.constant 26 : index
      %475 = memref.load %arg2[%c26] : memref<98xf32, #tpu.memory_space<smem>>
      %c0_177 = arith.constant 0 : index
      %c130 = arith.constant 130 : index
      %476 = vector.load %arg7[%c0_177, %c130] : memref<2x435xf32, #tpu.memory_space<vmem>>, vector<1x256xf32>
      %477 = vector.broadcast %475 : f32 to vector<1x256xf32>
      %478 = arith.mulf %476, %477 : vector<1x256xf32>
      %479 = arith.addf %474, %478 : vector<1x256xf32>
      %c33 = arith.constant 33 : index
      %480 = memref.load %arg2[%c33] : memref<98xf32, #tpu.memory_space<smem>>
      %c0_178 = arith.constant 0 : index
      %c146 = arith.constant 146 : index
      %481 = vector.load %arg7[%c0_178, %c146] : memref<2x435xf32, #tpu.memory_space<vmem>>, vector<1x256xf32>
      %482 = vector.broadcast %480 : f32 to vector<1x256xf32>
      %483 = arith.mulf %481, %482 : vector<1x256xf32>
      %484 = arith.addf %479, %483 : vector<1x256xf32>
      %c40 = arith.constant 40 : index
      %485 = memref.load %arg2[%c40] : memref<98xf32, #tpu.memory_space<smem>>
      %c0_179 = arith.constant 0 : index
      %c162 = arith.constant 162 : index
      %486 = vector.load %arg7[%c0_179, %c162] : memref<2x435xf32, #tpu.memory_space<vmem>>, vector<1x256xf32>
      %487 = vector.broadcast %485 : f32 to vector<1x256xf32>
      %488 = arith.mulf %486, %487 : vector<1x256xf32>
      %489 = arith.addf %484, %488 : vector<1x256xf32>
      %c47 = arith.constant 47 : index
      %490 = memref.load %arg2[%c47] : memref<98xf32, #tpu.memory_space<smem>>
      %c0_180 = arith.constant 0 : index
      %c178 = arith.constant 178 : index
      %491 = vector.load %arg7[%c0_180, %c178] : memref<2x435xf32, #tpu.memory_space<vmem>>, vector<1x256xf32>
      %492 = vector.broadcast %490 : f32 to vector<1x256xf32>
      %493 = arith.mulf %491, %492 : vector<1x256xf32>
      %494 = arith.addf %489, %493 : vector<1x256xf32>
      %c54 = arith.constant 54 : index
      %495 = memref.load %arg2[%c54] : memref<98xf32, #tpu.memory_space<smem>>
      %c1_181 = arith.constant 1 : index
      %c82_182 = arith.constant 82 : index
      %496 = vector.load %arg7[%c1_181, %c82_182] : memref<2x435xf32, #tpu.memory_space<vmem>>, vector<1x256xf32>
      %497 = vector.broadcast %495 : f32 to vector<1x256xf32>
      %498 = arith.mulf %496, %497 : vector<1x256xf32>
      %499 = arith.addf %494, %498 : vector<1x256xf32>
      %c61 = arith.constant 61 : index
      %500 = memref.load %arg2[%c61] : memref<98xf32, #tpu.memory_space<smem>>
      %c1_183 = arith.constant 1 : index
      %c98_184 = arith.constant 98 : index
      %501 = vector.load %arg7[%c1_183, %c98_184] : memref<2x435xf32, #tpu.memory_space<vmem>>, vector<1x256xf32>
      %502 = vector.broadcast %500 : f32 to vector<1x256xf32>
      %503 = arith.mulf %501, %502 : vector<1x256xf32>
      %504 = arith.addf %499, %503 : vector<1x256xf32>
      %c68 = arith.constant 68 : index
      %505 = memref.load %arg2[%c68] : memref<98xf32, #tpu.memory_space<smem>>
      %c1_185 = arith.constant 1 : index
      %c114_186 = arith.constant 114 : index
      %506 = vector.load %arg7[%c1_185, %c114_186] : memref<2x435xf32, #tpu.memory_space<vmem>>, vector<1x256xf32>
      %507 = vector.broadcast %505 : f32 to vector<1x256xf32>
      %508 = arith.mulf %506, %507 : vector<1x256xf32>
      %509 = arith.addf %504, %508 : vector<1x256xf32>
      %c75 = arith.constant 75 : index
      %510 = memref.load %arg2[%c75] : memref<98xf32, #tpu.memory_space<smem>>
      %c1_187 = arith.constant 1 : index
      %c130_188 = arith.constant 130 : index
      %511 = vector.load %arg7[%c1_187, %c130_188] : memref<2x435xf32, #tpu.memory_space<vmem>>, vector<1x256xf32>
      %512 = vector.broadcast %510 : f32 to vector<1x256xf32>
      %513 = arith.mulf %511, %512 : vector<1x256xf32>
      %514 = arith.addf %509, %513 : vector<1x256xf32>
      %c82_189 = arith.constant 82 : index
      %515 = memref.load %arg2[%c82_189] : memref<98xf32, #tpu.memory_space<smem>>
      %c1_190 = arith.constant 1 : index
      %c146_191 = arith.constant 146 : index
      %516 = vector.load %arg7[%c1_190, %c146_191] : memref<2x435xf32, #tpu.memory_space<vmem>>, vector<1x256xf32>
      %517 = vector.broadcast %515 : f32 to vector<1x256xf32>
      %518 = arith.mulf %516, %517 : vector<1x256xf32>
      %519 = arith.addf %514, %518 : vector<1x256xf32>
      %c89 = arith.constant 89 : index
      %520 = memref.load %arg2[%c89] : memref<98xf32, #tpu.memory_space<smem>>
      %c1_192 = arith.constant 1 : index
      %c162_193 = arith.constant 162 : index
      %521 = vector.load %arg7[%c1_192, %c162_193] : memref<2x435xf32, #tpu.memory_space<vmem>>, vector<1x256xf32>
      %522 = vector.broadcast %520 : f32 to vector<1x256xf32>
      %523 = arith.mulf %521, %522 : vector<1x256xf32>
      %524 = arith.addf %519, %523 : vector<1x256xf32>
      %c96_194 = arith.constant 96 : index
      %525 = memref.load %arg2[%c96_194] : memref<98xf32, #tpu.memory_space<smem>>
      %c1_195 = arith.constant 1 : index
      %c178_196 = arith.constant 178 : index
      %526 = vector.load %arg7[%c1_195, %c178_196] : memref<2x435xf32, #tpu.memory_space<vmem>>, vector<1x256xf32>
      %527 = vector.broadcast %525 : f32 to vector<1x256xf32>
      %528 = arith.mulf %526, %527 : vector<1x256xf32>
      %529 = arith.addf %524, %528 : vector<1x256xf32>
      %c2_i32 = arith.constant 2 : i32
      %530 = vector.broadcast %c2_i32 : i32 to vector<1x256xi32>
      %531 = arith.addi %53, %530 : vector<1x256xi32>
      %c0_i32_197 = arith.constant 0 : i32
      %532 = vector.broadcast %c0_i32_197 : i32 to vector<1x256xi32>
      %533 = arith.cmpi sge, %531, %532 : vector<1x256xi32>
      %c2_i32_198 = arith.constant 2 : i32
      %534 = vector.broadcast %c2_i32_198 : i32 to vector<1x256xi32>
      %535 = arith.addi %53, %534 : vector<1x256xi32>
      %c16_i32_199 = arith.constant 16 : i32
      %536 = vector.broadcast %c16_i32_199 : i32 to vector<1x256xi32>
      %537 = arith.cmpi slt, %535, %536 : vector<1x256xi32>
      %538 = arith.andi %533, %537 : vector<1x256xi1>
      %cst_200 = arith.constant 0.000000e+00 : f32
      %539 = vector.broadcast %cst_200 : f32 to vector<1x256xf32>
      %540 = arith.select %538, %529, %539 : vector<1x256xi1>, vector<1x256xf32>
      %541 = arith.addf %458, %540 : vector<1x256xf32>
      %cst_201 = arith.constant 0.000000e+00 : f32
      %542 = vector.broadcast %cst_201 : f32 to vector<1x256xf32>
      %c6 = arith.constant 6 : index
      %543 = memref.load %arg2[%c6] : memref<98xf32, #tpu.memory_space<smem>>
      %c0_202 = arith.constant 0 : index
      %c83 = arith.constant 83 : index
      %544 = vector.load %arg7[%c0_202, %c83] : memref<2x435xf32, #tpu.memory_space<vmem>>, vector<1x256xf32>
      %545 = vector.broadcast %543 : f32 to vector<1x256xf32>
      %546 = arith.mulf %544, %545 : vector<1x256xf32>
      %547 = arith.addf %542, %546 : vector<1x256xf32>
      %c13 = arith.constant 13 : index
      %548 = memref.load %arg2[%c13] : memref<98xf32, #tpu.memory_space<smem>>
      %c0_203 = arith.constant 0 : index
      %c99 = arith.constant 99 : index
      %549 = vector.load %arg7[%c0_203, %c99] : memref<2x435xf32, #tpu.memory_space<vmem>>, vector<1x256xf32>
      %550 = vector.broadcast %548 : f32 to vector<1x256xf32>
      %551 = arith.mulf %549, %550 : vector<1x256xf32>
      %552 = arith.addf %547, %551 : vector<1x256xf32>
      %c20 = arith.constant 20 : index
      %553 = memref.load %arg2[%c20] : memref<98xf32, #tpu.memory_space<smem>>
      %c0_204 = arith.constant 0 : index
      %c115 = arith.constant 115 : index
      %554 = vector.load %arg7[%c0_204, %c115] : memref<2x435xf32, #tpu.memory_space<vmem>>, vector<1x256xf32>
      %555 = vector.broadcast %553 : f32 to vector<1x256xf32>
      %556 = arith.mulf %554, %555 : vector<1x256xf32>
      %557 = arith.addf %552, %556 : vector<1x256xf32>
      %c27 = arith.constant 27 : index
      %558 = memref.load %arg2[%c27] : memref<98xf32, #tpu.memory_space<smem>>
      %c0_205 = arith.constant 0 : index
      %c131 = arith.constant 131 : index
      %559 = vector.load %arg7[%c0_205, %c131] : memref<2x435xf32, #tpu.memory_space<vmem>>, vector<1x256xf32>
      %560 = vector.broadcast %558 : f32 to vector<1x256xf32>
      %561 = arith.mulf %559, %560 : vector<1x256xf32>
      %562 = arith.addf %557, %561 : vector<1x256xf32>
      %c34 = arith.constant 34 : index
      %563 = memref.load %arg2[%c34] : memref<98xf32, #tpu.memory_space<smem>>
      %c0_206 = arith.constant 0 : index
      %c147 = arith.constant 147 : index
      %564 = vector.load %arg7[%c0_206, %c147] : memref<2x435xf32, #tpu.memory_space<vmem>>, vector<1x256xf32>
      %565 = vector.broadcast %563 : f32 to vector<1x256xf32>
      %566 = arith.mulf %564, %565 : vector<1x256xf32>
      %567 = arith.addf %562, %566 : vector<1x256xf32>
      %c41 = arith.constant 41 : index
      %568 = memref.load %arg2[%c41] : memref<98xf32, #tpu.memory_space<smem>>
      %c0_207 = arith.constant 0 : index
      %c163 = arith.constant 163 : index
      %569 = vector.load %arg7[%c0_207, %c163] : memref<2x435xf32, #tpu.memory_space<vmem>>, vector<1x256xf32>
      %570 = vector.broadcast %568 : f32 to vector<1x256xf32>
      %571 = arith.mulf %569, %570 : vector<1x256xf32>
      %572 = arith.addf %567, %571 : vector<1x256xf32>
      %c48 = arith.constant 48 : index
      %573 = memref.load %arg2[%c48] : memref<98xf32, #tpu.memory_space<smem>>
      %c0_208 = arith.constant 0 : index
      %c179 = arith.constant 179 : index
      %574 = vector.load %arg7[%c0_208, %c179] : memref<2x435xf32, #tpu.memory_space<vmem>>, vector<1x256xf32>
      %575 = vector.broadcast %573 : f32 to vector<1x256xf32>
      %576 = arith.mulf %574, %575 : vector<1x256xf32>
      %577 = arith.addf %572, %576 : vector<1x256xf32>
      %c55 = arith.constant 55 : index
      %578 = memref.load %arg2[%c55] : memref<98xf32, #tpu.memory_space<smem>>
      %c1_209 = arith.constant 1 : index
      %c83_210 = arith.constant 83 : index
      %579 = vector.load %arg7[%c1_209, %c83_210] : memref<2x435xf32, #tpu.memory_space<vmem>>, vector<1x256xf32>
      %580 = vector.broadcast %578 : f32 to vector<1x256xf32>
      %581 = arith.mulf %579, %580 : vector<1x256xf32>
      %582 = arith.addf %577, %581 : vector<1x256xf32>
      %c62 = arith.constant 62 : index
      %583 = memref.load %arg2[%c62] : memref<98xf32, #tpu.memory_space<smem>>
      %c1_211 = arith.constant 1 : index
      %c99_212 = arith.constant 99 : index
      %584 = vector.load %arg7[%c1_211, %c99_212] : memref<2x435xf32, #tpu.memory_space<vmem>>, vector<1x256xf32>
      %585 = vector.broadcast %583 : f32 to vector<1x256xf32>
      %586 = arith.mulf %584, %585 : vector<1x256xf32>
      %587 = arith.addf %582, %586 : vector<1x256xf32>
      %c69 = arith.constant 69 : index
      %588 = memref.load %arg2[%c69] : memref<98xf32, #tpu.memory_space<smem>>
      %c1_213 = arith.constant 1 : index
      %c115_214 = arith.constant 115 : index
      %589 = vector.load %arg7[%c1_213, %c115_214] : memref<2x435xf32, #tpu.memory_space<vmem>>, vector<1x256xf32>
      %590 = vector.broadcast %588 : f32 to vector<1x256xf32>
      %591 = arith.mulf %589, %590 : vector<1x256xf32>
      %592 = arith.addf %587, %591 : vector<1x256xf32>
      %c76 = arith.constant 76 : index
      %593 = memref.load %arg2[%c76] : memref<98xf32, #tpu.memory_space<smem>>
      %c1_215 = arith.constant 1 : index
      %c131_216 = arith.constant 131 : index
      %594 = vector.load %arg7[%c1_215, %c131_216] : memref<2x435xf32, #tpu.memory_space<vmem>>, vector<1x256xf32>
      %595 = vector.broadcast %593 : f32 to vector<1x256xf32>
      %596 = arith.mulf %594, %595 : vector<1x256xf32>
      %597 = arith.addf %592, %596 : vector<1x256xf32>
      %c83_217 = arith.constant 83 : index
      %598 = memref.load %arg2[%c83_217] : memref<98xf32, #tpu.memory_space<smem>>
      %c1_218 = arith.constant 1 : index
      %c147_219 = arith.constant 147 : index
      %599 = vector.load %arg7[%c1_218, %c147_219] : memref<2x435xf32, #tpu.memory_space<vmem>>, vector<1x256xf32>
      %600 = vector.broadcast %598 : f32 to vector<1x256xf32>
      %601 = arith.mulf %599, %600 : vector<1x256xf32>
      %602 = arith.addf %597, %601 : vector<1x256xf32>
      %c90 = arith.constant 90 : index
      %603 = memref.load %arg2[%c90] : memref<98xf32, #tpu.memory_space<smem>>
      %c1_220 = arith.constant 1 : index
      %c163_221 = arith.constant 163 : index
      %604 = vector.load %arg7[%c1_220, %c163_221] : memref<2x435xf32, #tpu.memory_space<vmem>>, vector<1x256xf32>
      %605 = vector.broadcast %603 : f32 to vector<1x256xf32>
      %606 = arith.mulf %604, %605 : vector<1x256xf32>
      %607 = arith.addf %602, %606 : vector<1x256xf32>
      %c97_222 = arith.constant 97 : index
      %608 = memref.load %arg2[%c97_222] : memref<98xf32, #tpu.memory_space<smem>>
      %c1_223 = arith.constant 1 : index
      %c179_224 = arith.constant 179 : index
      %609 = vector.load %arg7[%c1_223, %c179_224] : memref<2x435xf32, #tpu.memory_space<vmem>>, vector<1x256xf32>
      %610 = vector.broadcast %608 : f32 to vector<1x256xf32>
      %611 = arith.mulf %609, %610 : vector<1x256xf32>
      %612 = arith.addf %607, %611 : vector<1x256xf32>
      %c3_i32 = arith.constant 3 : i32
      %613 = vector.broadcast %c3_i32 : i32 to vector<1x256xi32>
      %614 = arith.addi %53, %613 : vector<1x256xi32>
      %c0_i32_225 = arith.constant 0 : i32
      %615 = vector.broadcast %c0_i32_225 : i32 to vector<1x256xi32>
      %616 = arith.cmpi sge, %614, %615 : vector<1x256xi32>
      %c3_i32_226 = arith.constant 3 : i32
      %617 = vector.broadcast %c3_i32_226 : i32 to vector<1x256xi32>
      %618 = arith.addi %53, %617 : vector<1x256xi32>
      %c16_i32_227 = arith.constant 16 : i32
      %619 = vector.broadcast %c16_i32_227 : i32 to vector<1x256xi32>
      %620 = arith.cmpi slt, %618, %619 : vector<1x256xi32>
      %621 = arith.andi %616, %620 : vector<1x256xi1>
      %cst_228 = arith.constant 0.000000e+00 : f32
      %622 = vector.broadcast %cst_228 : f32 to vector<1x256xf32>
      %623 = arith.select %621, %612, %622 : vector<1x256xi1>, vector<1x256xf32>
      %624 = arith.addf %541, %623 : vector<1x256xf32>
      %625 = arith.negf %624 : vector<1x256xf32>
      %626 = math.exp %625 : vector<1x256xf32>
      %cst_229 = arith.constant 1.000000e+00 : f32
      %627 = vector.broadcast %cst_229 : f32 to vector<1x256xf32>
      %628 = arith.addf %627, %626 : vector<1x256xf32>
      %629 = arith.divf %627, %628 : vector<1x256xf32>
      %c0_230 = arith.constant 0 : index
      %c0_231 = arith.constant 0 : index
      %c0_232 = arith.constant 0 : index
      %630 = vector.load %arg4[%c0_230, %c0_231, %c0_232] : memref<1x1x256xf32, #tpu.memory_space<vmem>>, vector<1x1x256xf32>
      %631 = vector.shape_cast %630 : vector<1x1x256xf32> to vector<1x256xf32>
      %632 = vector.shape_cast %629 : vector<1x256xf32> to vector<1x1x256xf32>
      tpu.vector_store %arg4[%c0_230, %c0_231, %c0_232], %632 {strides = array<i32>} : memref<1x1x256xf32, #tpu.memory_space<vmem>>, vector<1x1x256xf32>,
    } else {
    }
    return
  }
  func.func @transform_0(%arg0: i32, %arg1: i32) -> i32 {
    %c0_i32 = arith.constant 0 : i32
    %c0_i32_0 = arith.constant 0 : i32
    return %c0_i32 : i32
  }
  func.func @transform_1(%arg0: i32, %arg1: i32) -> (i32, i32, i32) {
    %c0_i32 = arith.constant 0 : i32
    %c0_i32_0 = arith.constant 0 : i32
    return %arg0, %arg1, %c0_i32 : i32, i32, i32
  }
  func.func @transform_2(%arg0: i32, %arg1: i32) -> (i32, i32, i32) {
    %c0_i32 = arith.constant 0 : i32
    %c0_i32_0 = arith.constant 0 : i32
    %c0_i32_1 = arith.constant 0 : i32
    return %arg0, %c0_i32, %c0_i32_0 : i32, i32, i32
  }
}

</mosaic_0001>

<llo_original>
// kernel: tpu_custom_call.1
$region0: #{tpu_custom_call.1}
  #allocation0 [shape = 'u32[]', space=smem, size = 0x4, offset = 0x4, fixed_abs, tag = 'smem constant byte address 0x4 - core index']
  #allocation1 [shape = 'u32[72,128]{1,0:T(1,128)}', space=vmem, size = 0x9000, scoped, tag = 'internal scratch']
  #allocation2 [shape = 'f32[8,256]{1,0:T(8,128)}', space=vmem, size = 0x2000, scoped, tag = 'scratch operand']
  #allocation3 [shape = 'f32[8,256]{1,0:T(8,128)}', space=vmem, size = 0x2000, scoped, tag = 'scratch operand']
  #allocation4 [shape = 'f32[2,435]{1,0:T(2,128)}', space=vmem, size = 0x1000, scoped, tag = 'scratch operand']
  %s0 = inlined_call_operand.hbm [shape: f32[98], index: 0, kind: input, shape index: {}]
  %s1 = inlined_call_operand.hbm [shape: f32[2,4,256], index: 1, kind: input, shape index: {}]
  %s2 = inlined_call_operand.hbm [shape: f32[2,1,256], index: 2, kind: output, shape index: {}]
  %s3 = sld [smem:[#allocation0]]
  $region57: #{tpu_custom_call.1} parent=0
    _
  %s5 = ssub.s32 1, %s3
  %s6 = scalar_select 0, %s5, %s3
  $region1: #{tpu_custom_call.1} parent=0
    #allocation5 [shape = 'u8[512]{0}', space=smem, size = 0x200, scoped, tag = 'input window, operand 0, single buffered']
    #allocation6 [shape = 's32[2]{0}', space=sflag, size = 0x8, scoped, tag = 'scoped memory for tpu_custom_call.1']
    #allocation7 [shape = 's32[2]{0}', space=sflag, size = 0x8, scoped, tag = 'scoped memory for tpu_custom_call.1']
    #allocation8 [shape = 's32[2]{0}', space=sflag, size = 0x8, scoped, tag = 'scoped memory for tpu_custom_call.1']
    #allocation9 [shape = 'u8[8192]{0}', space=vmem, size = 0x2000, scoped, tag = 'input window, operand 1']
    #allocation10 [shape = 'u8[2048]{0}', space=vmem, size = 0x800, scoped, tag = 'output window, operand 0']
    %7 = vsyncpa [#allocation8], 0
    %8 = vsyncpa [#allocation6], 0
    %s9 = scalar_lea.sflag [#allocation6], 1
    %10 = vsyncpa %s9, 0
    %11 = vsyncpa [#allocation7], 0
    %s12 = scalar_lea.sflag [#allocation7], 1
    %13 = vsyncpa %s12, 0
    loop: start=0, step=1, limit=4
    $region2: #{tpu_custom_call.1} parent=1 // loop_pre_header
      _
    $region3: #{tpu_custom_call.1} parent=1 // loop_header
      %s15 = sphi 0, %s19
      %p16 = scmp.ge.s32.totalorder %s15, 4
      %s22 = sphi 0, %s34
      %s23 = sphi 0, %s30
      %s24 = sphi 0, %s22
      %s25 = sphi 0, %s23
      %s26 = sphi 0, %s24
      %s27 = sphi 0, %s25
      %s35 = sphi 0, %s35
      %s37 = sphi 0, %s35
      %s38 = sphi 0, %s37
      %s52 = sphi 0, %s38
      %s60 = sphi 0, %s62
      %s63 = sphi 0, %s60
      %s64 = sphi 0, %s63
      %s80 = sphi 0, %s64
      %s86 = sphi 0, %s88
      %s89 = sphi 0, %s86
      %s90 = sphi 0, %s89
      %s106 = sphi 0, %s90
    $region4: #{tpu_custom_call.1} parent=1 // loop_header_branch
      %18 = sbr.rel (%p16) target = $region8
    $region5: #{tpu_custom_call.1} parent=1 // loop_body
      %s20 = ssub.s32 %s15, 1
      %s21 = ssub.s32 %s15, 2
      %s28 = sadd.s32 1, %s23
      %p29 = scmp.ge.s32.totalorder %s28, 1
      %s30 = scalar_select %p29, 0, %s28
      %s31 = sadd.s32 1, %s22
      %s32 = scalar_select %p29, %s31, %s22
      %p33 = scmp.ge.s32.totalorder %s32, 2
      %s34 = scalar_select %p33, 0, %s32
      %s36 = sadd.s32 %s35, 1
      %p39 = scmp.eq.s32.totalorder %s15, 1
      %p40 = scmp.ne.s32.totalorder %s35, %s37
      %p41 = scmp.eq.s32.totalorder %s15, 0
      %p42 = por %p40, %p41
      %p43 = scmp.ne.s32.totalorder %s35, %s37
      %p44 = scmp.eq.s32.totalorder %s20, 1
      %p45 = por %p43, %p44
      %p46 = scmp.ne.s32.totalorder %s37, %s38
      %p47 = scmp.eq.s32.totalorder %s20, 0
      %p48 = por %p46, %p47
      %p49 = scmp.ne.s32.totalorder %s37, %s38
      %p50 = scmp.eq.s32.totalorder %s21, 1
      %p51 = por %p49, %p50
      %p53 = scmp.ne.s32.totalorder %s38, %s52
      %p54 = scmp.eq.s32.totalorder %s21, 0
      %p55 = por %p53, %p54
      %s56 = ssub.s32 %s22, %s34
      %s57 = ssub.s32 %s23, %s30
      %s58 = sor.u32 %s56, %s57
      %p59 = scmp.eq.s32.totalorder %s58, 0
      %s61 = sadd.s32 %s60, 1
      %s62 = scalar_select %p59, %s60, %s61
      %p65 = pneg %p59
      %p66 = scmp.eq.s32.totalorder %s15, 1
      %p67 = por %p65, %p66
      %p68 = scmp.ne.s32.totalorder %s60, %s63
      %p69 = scmp.eq.s32.totalorder %s15, 0
      %p70 = por %p68, %p69
      %p71 = scmp.ne.s32.totalorder %s60, %s63
      %p72 = scmp.eq.s32.totalorder %s20, 1
      %p73 = por %p71, %p72
      %p74 = scmp.ne.s32.totalorder %s63, %s64
      %p75 = scmp.eq.s32.totalorder %s20, 0
      %p76 = por %p74, %p75
      %p77 = scmp.ne.s32.totalorder %s63, %s64
      %p78 = scmp.eq.s32.totalorder %s21, 1
      %p79 = por %p77, %p78
      %p81 = scmp.ne.s32.totalorder %s64, %s80
      %p82 = scmp.eq.s32.totalorder %s21, 0
      %p83 = por %p81, %p82
      %s84 = ssub.s32 %s22, %s34
      %p85 = scmp.eq.s32.totalorder %s84, 0
      %s87 = sadd.s32 %s86, 1
      %s88 = scalar_select %p85, %s86, %s87
      %p91 = pneg %p85
      %p92 = scmp.eq.s32.totalorder %s15, 1
      %p93 = por %p91, %p92
      %p94 = scmp.ne.s32.totalorder %s86, %s89
      %p95 = scmp.eq.s32.totalorder %s15, 0
      %p96 = por %p94, %p95
      %p97 = scmp.ne.s32.totalorder %s86, %s89
      %p98 = scmp.eq.s32.totalorder %s20, 1
      %p99 = por %p97, %p98
      %p100 = scmp.ne.s32.totalorder %s89, %s90
      %p101 = scmp.eq.s32.totalorder %s20, 0
      %p102 = por %p100, %p101
      %p103 = scmp.ne.s32.totalorder %s89, %s90
      %p104 = scmp.eq.s32.totalorder %s21, 1
      %p105 = por %p103, %p104
      %p107 = scmp.ne.s32.totalorder %s90, %s106
      %p108 = scmp.eq.s32.totalorder %s21, 0
      %p109 = por %p107, %p108
      %p110 = scmp.le.s32.totalorder 1, %s15
      %p111 = scmp.lt.s32.totalorder %s15, 3
      %p112 = pnand %p110, %p111
      %p113 = pneg %p112
      // Predicated region
      $region9: #{tpu_custom_call.1} parent=5 // pred_check
        _
      $region10: #{tpu_custom_call.1} parent=5 // pred_check_branch
        %115 = sbr.rel (%p112) target = $region12
      $region11: #{tpu_custom_call.1} parent=5 // pred_region
        %s116 = ssub.s32 %s15, 1
        // Predicated region
        $region13: #{tpu_custom_call.1} parent=11 // pred_check
          %p117 = pneg %p48
        $region14: #{tpu_custom_call.1} parent=11 // pred_check_branch
          %119 = sbr.rel (%p117) target = $region16
        $region15: #{tpu_custom_call.1} parent=11 // pred_region
          %121 = vsyncadd [#allocation8], 0
          %s123 = sshll.u32 %s0, 4
          %s124 = int_to_ptr.hbm [resolvable:$true] %s123
          %126 = dma.hbm_to_smem %s124, 16, [#allocation5], [#allocation8]
        $region16: #{tpu_custom_call.1} parent=11 // pred_fallthru
          _
      $region12: #{tpu_custom_call.1} parent=5 // pred_fallthru
        _
      %p127 = scmp.lt.s32.totalorder %s15, 2
      // Predicated region
      $region17: #{tpu_custom_call.1} parent=5 // pred_check
        %p128 = pneg %p127
      $region18: #{tpu_custom_call.1} parent=5 // pred_check_branch
        %130 = sbr.rel (%p128) target = $region20
      $region19: #{tpu_custom_call.1} parent=5 // pred_region
        // Predicated region
        $region21: #{tpu_custom_call.1} parent=19 // pred_check
          %p131 = pneg %p70
        $region22: #{tpu_custom_call.1} parent=19 // pred_check_branch
          %133 = sbr.rel (%p131) target = $region24
        $region23: #{tpu_custom_call.1} parent=19 // pred_region
          %s134 = sand.u32 %s60, 1
          %s135 = scalar_lea.sflag [#allocation6], %s134
          %s136 = sand.u32 %s60, 1
          %s137 = smul.addr %s136, 8
          %s138 = scalar_lea.vmem [#allocation9], %s137
          %140 = vsyncadd %s135, 0
          %s141 = smul.addr %s23, 2
          %s142 = smul.addr %s22, 2
          %s143 = sadd.s32 %s141, %s142
          %s144 = smul.addr %s143, 4
          %s145 = scalar_lea.hbm %s1, %s144
          %s147 = sshll.u32 %s145, 4
          %s148 = int_to_ptr.hbm [resolvable:$true] %s147
          %s149 = sshll.u32 %s138, 4
          %s150 = int_to_ptr.vmem [resolvable:$true] %s149
          %152 = dma.hbm_to_vmem [thread:$0]  %s148, 128, %s150, %s135
        $region24: #{tpu_custom_call.1} parent=19 // pred_fallthru
          _
      $region20: #{tpu_custom_call.1} parent=5 // pred_fallthru
        _
      %p153 = scmp.le.s32.totalorder 1, %s15
      %p154 = scmp.lt.s32.totalorder %s15, 3
      %p155 = pnand %p153, %p154
      %p156 = pneg %p155
      // Predicated region
      $region25: #{tpu_custom_call.1} parent=5 // pred_check
        _
      $region26: #{tpu_custom_call.1} parent=5 // pred_check_branch
        %158 = sbr.rel (%p155) target = $region28
      $region27: #{tpu_custom_call.1} parent=5 // pred_region
        %s159 = ssub.s32 %s15, 1
        // Predicated region
        $region29: #{tpu_custom_call.1} parent=27 // pred_check
          %p160 = pneg %p48
        $region30: #{tpu_custom_call.1} parent=27 // pred_check_branch
          %162 = sbr.rel (%p160) target = $region32
        $region31: #{tpu_custom_call.1} parent=27 // pred_region
          %164 = dma.done [#allocation8], 16
        $region32: #{tpu_custom_call.1} parent=27 // pred_fallthru
          _
        %s165 = sand.u32 %s63, 1
        %s166 = scalar_lea.sflag [#allocation6], %s165
        %s167 = sand.u32 %s63, 1
        %s168 = smul.addr %s167, 8
        %s169 = scalar_lea.vmem [#allocation9], %s168
        // Predicated region
        $region33: #{tpu_custom_call.1} parent=27 // pred_check
          %p170 = pneg %p76
        $region34: #{tpu_custom_call.1} parent=27 // pred_check_branch
          %172 = sbr.rel (%p170) target = $region36
        $region35: #{tpu_custom_call.1} parent=27 // pred_region
          %174 = dma.done %s166, 128
        $region36: #{tpu_custom_call.1} parent=27 // pred_fallthru
          _
        %175 = sfence
        %p176 = pneg %p48
        %p177 = pneg %p45
        %s178 = sand.u32 %s63, 1
        %s179 = scalar_lea.sflag [#allocation6], %s178
        %s180 = sand.u32 %s63, 1
        %s181 = smul.addr %s180, 8
        %s182 = scalar_lea.vmem [#allocation9], %s181
        %p183 = pneg %p76
        %p184 = pneg %p73
        %p185 = pneg %p102
        %p186 = pneg %p99
        %s187 = sand.u32 %s89, 1
        %s188 = scalar_lea.sflag [#allocation7], %s187
        %s189 = sand.u32 %s89, 1
        %s190 = smul.addr %s189, 2
        %s191 = scalar_lea.vmem [#allocation10], %s190
        %p192 = scmp.eq.s32.totalorder %s25, 0
        // Predicated region
        $region37: #{tpu_custom_call.1} parent=27 // pred_check
          %p193 = pneg %p192
        $region38: #{tpu_custom_call.1} parent=27 // pred_check_branch
          %195 = sbr.rel (%p193) target = $region40
        $region39: #{tpu_custom_call.1} parent=27 // pred_region
          %196 = vst [vmem:[#allocation2] sm:$0xff] 0.0
          %197 = vst [vmem:[#allocation2 + $0x8] sm:$0xff] 0.0
          %198 = vst [vmem:[#allocation3] sm:$0xff] -inf
          %199 = vst [vmem:[#allocation3 + $0x8] sm:$0xff] -inf
        $region40: #{tpu_custom_call.1} parent=27 // pred_fallthru
          _
        %v200 = vld [vmem:[%s169] sm:$0xff]
        %202 = vst [vmem:[#allocation1] ss:$2 sm:$0xff] %v200
        %v203 = vld.sshfl [vmem:[#allocation1] sm:$0xff pattern:$0x75316420]
        %v204 = vld.sshfl [vmem:[#allocation1 + $0x8] sm:$0xff pattern:$0x75316420]
        %vm207 = vcmask 1043456
        %v208 = vsel %vm207, %v203, 0.0
        %v209 = vsel %vm207, %v204, 0.0
        %v210 = vadd.f32 %v208, 0.0
        %v211 = vadd.f32 %v209, 0.0
        %212 = vst [vmem:[#allocation1] ss:$2 sm:$0xff] %v200
        %v213 = vld.sshfl [vmem:[#allocation1] sm:$0xff pattern:$0x75316420]
        %v214 = vld.sshfl [vmem:[#allocation1 + $0x8] sm:$0xff pattern:$0x75316420]
        %v217 = vsel %vm207, %v213, -inf
        %v218 = vsel %vm207, %v214, -inf
        %v219 = vld [vmem:[#allocation2] sm:$0xff]
        %v220 = vld [vmem:[#allocation2 + $0x8] sm:$0xff]
        %v221 = vadd.f32 %v219, %v210
        %v222 = vadd.f32 %v220, %v211
        %223 = vst [vmem:[#allocation2] sm:$0xff] %v221
        %224 = vst [vmem:[#allocation2 + $0x8] sm:$0xff] %v222
        %v225 = vld [vmem:[#allocation3] sm:$0xff]
        %v226 = vld [vmem:[#allocation3 + $0x8] sm:$0xff]
        %v227 = vmax.f32 %v225, %v217
        %v228 = vmax.f32 %v226, %v218
        %229 = vst [vmem:[#allocation3] sm:$0xff] %v227
        %230 = vst [vmem:[#allocation3 + $0x8] sm:$0xff] %v228
        // Predicated region
        $region41: #{tpu_custom_call.1} parent=27 // pred_check
          %p231 = pneg %p192
        $region42: #{tpu_custom_call.1} parent=27 // pred_check_branch
          %233 = sbr.rel (%p231) target = $region44
        $region43: #{tpu_custom_call.1} parent=27 // pred_region
          %v234 = vld [vmem:[#allocation2] sm:$0xff]
          %v235 = vld [vmem:[#allocation2 + $0x8] sm:$0xff]
          %v236 = vrot.slane %v234, 4
          %v237 = vadd.f32 %v234, %v236
          %v238 = vrot.slane %v237, 2
          %v239 = vadd.f32 %v237, %v238
          %v240 = vrot.slane %v239, 1
          %v241 = vadd.f32 %v239, %v240
          %v242 = vrot.slane %v235, 4
          %v243 = vadd.f32 %v235, %v242
          %v244 = vrot.slane %v243, 2
          %v245 = vadd.f32 %v243, %v244
          %v246 = vrot.slane %v245, 1
          %v247 = vadd.f32 %v245, %v246
          %v248 = vmul.f32 %v241, 0.25
          %v249 = vmul.f32 %v247, 0.25
          %v250 = vld [vmem:[#allocation3] sm:$0xff]
          %v251 = vld [vmem:[#allocation3 + $0x8] sm:$0xff]
          %v252 = vrot.slane %v250, 4
          %v253 = vmax.f32 %v250, %v252
          %v254 = vrot.slane %v253, 2
          %v255 = vmax.f32 %v253, %v254
          %v256 = vrot.slane %v255, 1
          %v257 = vmax.f32 %v255, %v256
          %v258 = vrot.slane %v251, 4
          %v259 = vmax.f32 %v251, %v258
          %v260 = vrot.slane %v259, 2
          %v261 = vmax.f32 %v259, %v260
          %v262 = vrot.slane %v261, 1
          %v263 = vmax.f32 %v261, %v262
          %264 = vst [vmem:[#allocation4] sm:$0x3] 0.0
          %vm265 = vcmask 410624
          %266 = vst.msk [vmem:[#allocation4 + $0x6] sm:$0x3] %vm265, 0.0
          %v269 = vrot.slane %v249, 7
          %vm270 = vcmask 1040384
          %v271 = vsel %vm270, %v248, %v269
          %v273 = vlaneseq
          %vm274 = vcmp.ge.s32.totalorder %v273, 0
          %vm275 = vcmp.lt.s32.totalorder %v273, 256
          %vm276 = vmand %vm274, %vm275
          %s277 = scalar_lea.vmem [#allocation4], 2
          %278 = vst.msk [vmem:[%s277] ss:$2 sm:$0x3] %vm276, %v271
          %v281 = vrot.slane %v263, 7
          %v282 = vsel %vm270, %v257, %v281
          %s284 = scalar_lea.vmem [#allocation4], 3
          %285 = vst.msk [vmem:[%s284] ss:$2 sm:$0x3] %vm276, %v282
          %v286 = vlaneseq
          %v287 = vand.u32 %v286, 127
          %v288 = vadd.s32 %v287, 128
          %vm289 = vcmp.lt.s32.totalorder %v287, 0
          %v290 = vsub.s32 0, %v287
          %v291 = vsel %vm289, %v290, %v287
          %v292 = vshrl.u32 %v291, 4
          %v293 = vand.u32 %v291, 15
          %v294 = vsub.s32 0, %v293
          %v295 = vsel %vm289, %v294, %v293
          %vm296 = vcmp.lt.s32.totalorder %v288, 0
          %v297 = vsub.s32 0, %v288
          %v298 = vsel %vm296, %v297, %v288
          %v299 = vshrl.u32 %v298, 4
          %v300 = vand.u32 %v298, 15
          %v301 = vsub.s32 0, %v300
          %v302 = vsel %vm296, %v301, %v300
          %vm303 = vcmp.ne.s32.totalorder %v295, 0
          %vm304 = vcmp.ne.s32.totalorder %v302, 0
          %vm305 = vcmp.lt.s32.totalorder %v295, 0
          %vm306 = vcmp.lt.s32.totalorder %v302, 0
          %vm307 = vmand %vm305, %vm303
          %vm308 = vmand %vm306, %vm304
          %v309 = vadd.s32 %v295, 16
          %v310 = vadd.s32 %v302, 16
          %v311 = vsel %vm307, %v309, %v295
          %v312 = vsel %vm308, %v310, %v302
          %s313 = sld [smem:[#allocation5]]
          %v314 = vld [vmem:[#allocation4] ss:$2 sm:$0x7]
          %v315 = vstv %s313
          %v316 = vmul.f32 %v314, %v315
          %v317 = vadd.f32 %v316, 0.0
          %s318 = sld [smem:[#allocation5 + $0x7]]
          %v319 = vstv %s318
          %v320 = vmul.f32 %v314, %v319
          %322 = vrot.lane.b32.xlu0 %v320, 112
          %v323 = vpop.permute.xlu0 %322
          %v324 = vrot.slane %v323, 1
          %vm325 = vcmask 916480
          %v326 = vsel %vm325, %v323, %v324
          %v328 = vadd.f32 %v317, %v326
          %s329 = sld [smem:[#allocation5 + $0xe]]
          %v330 = vstv %s329
          %v331 = vmul.f32 %v314, %v330
          %333 = vrot.lane.b32.xlu0 %v331, 96
          %v334 = vpop.permute.xlu0 %333
          %v335 = vrot.slane %v334, 1
          %vm336 = vcmask 785408
          %v337 = vsel %vm336, %v334, %v335
          %v339 = vadd.f32 %v328, %v337
          %s340 = sld [smem:[#allocation5 + $0x15]]
          %v341 = vstv %s340
          %v342 = vmul.f32 %v314, %v341
          %344 = vrot.lane.b32.xlu0 %v342, 80
          %v345 = vpop.permute.xlu0 %344
          %v346 = vrot.slane %v345, 1
          %vm347 = vcmask 654336
          %v348 = vsel %vm347, %v345, %v346
          %v350 = vadd.f32 %v339, %v348
          %s351 = sld [smem:[#allocation5 + $0x1c]]
          %v352 = vld [vmem:[%s277] ss:$2 sm:$0x7]
          %v353 = vstv %s351
          %v354 = vmul.f32 %v352, %v353
          %356 = vrot.lane.b32.xlu0 %v354, 64
          %v357 = vpop.permute.xlu0 %356
          %v358 = vrot.slane %v357, 7
          %vm359 = vcmask 523264
          %v360 = vsel %vm359, %v358, %v357
          %v362 = vadd.f32 %v350, %v360
          %s363 = sld [smem:[#allocation5 + $0x23]]
          %v364 = vstv %s363
          %v365 = vmul.f32 %v352, %v364
          %367 = vrot.lane.b32.xlu0 %v365, 48
          %v368 = vpop.permute.xlu0 %367
          %v369 = vrot.slane %v368, 7
          %vm370 = vcmask 392192
          %v371 = vsel %vm370, %v369, %v368
          %v373 = vadd.f32 %v362, %v371
          %s374 = sld [smem:[#allocation5 + $0x2a]]
          %v375 = vstv %s374
          %v376 = vmul.f32 %v352, %v375
          %378 = vrot.lane.b32.xlu0 %v376, 32
          %v379 = vpop.permute.xlu0 %378
          %v380 = vrot.slane %v379, 7
          %vm381 = vcmask 261120
          %v382 = vsel %vm381, %v380, %v379
          %v384 = vadd.f32 %v373, %v382
          %s385 = sld [smem:[#allocation5 + $0x31]]
          %s386 = scalar_lea.vmem [#allocation4], 1
          %v387 = vld [vmem:[%s386] ss:$2 sm:$0x7]
          %v388 = vstv %s385
          %v389 = vmul.f32 %v387, %v388
          %v390 = vadd.f32 %v384, %v389
          %s391 = sld [smem:[#allocation5 + $0x38]]
          %v392 = vstv %s391
          %v393 = vmul.f32 %v387, %v392
          %395 = vrot.lane.b32.xlu0 %v393, 112
          %v396 = vpop.permute.xlu0 %395
          %v397 = vrot.slane %v396, 1
          %v398 = vsel %vm325, %v396, %v397
          %v400 = vadd.f32 %v390, %v398
          %s401 = sld [smem:[#allocation5 + $0x3f]]
          %v402 = vstv %s401
          %v403 = vmul.f32 %v387, %v402
          %405 = vrot.lane.b32.xlu0 %v403, 96
          %v406 = vpop.permute.xlu0 %405
          %v407 = vrot.slane %v406, 1
          %v408 = vsel %vm336, %v406, %v407
          %v410 = vadd.f32 %v400, %v408
          %s411 = sld [smem:[#allocation5 + $0x46]]
          %v412 = vstv %s411
          %v413 = vmul.f32 %v387, %v412
          %415 = vrot.lane.b32.xlu0 %v413, 80
          %v416 = vpop.permute.xlu0 %415
          %v417 = vrot.slane %v416, 1
          %v418 = vsel %vm347, %v416, %v417
          %v420 = vadd.f32 %v410, %v418
          %s421 = sld [smem:[#allocation5 + $0x4d]]
          %v422 = vld [vmem:[%s284] ss:$2 sm:$0x7]
          %v423 = vstv %s421
          %v424 = vmul.f32 %v422, %v423
          %426 = vrot.lane.b32.xlu0 %v424, 64
          %v427 = vpop.permute.xlu0 %426
          %v428 = vrot.slane %v427, 7
          %v429 = vsel %vm359, %v428, %v427
          %v431 = vadd.f32 %v420, %v429
          %s432 = sld [smem:[#allocation5 + $0x54]]
          %v433 = vstv %s432
          %v434 = vmul.f32 %v422, %v433
          %436 = vrot.lane.b32.xlu0 %v434, 48
          %v437 = vpop.permute.xlu0 %436
          %v438 = vrot.slane %v437, 7
          %v439 = vsel %vm370, %v438, %v437
          %v441 = vadd.f32 %v431, %v439
          %s442 = sld [smem:[#allocation5 + $0x5b]]
          %v443 = vstv %s442
          %v444 = vmul.f32 %v422, %v443
          %446 = vrot.lane.b32.xlu0 %v444, 32
          %v447 = vpop.permute.xlu0 %446
          %v448 = vrot.slane %v447, 7
          %v449 = vsel %vm381, %v448, %v447
          %v451 = vadd.f32 %v441, %v449
          %v452 = vadd.s32 %v311, 4294967293
          %v453 = vadd.s32 %v312, 4294967293
          %vm454 = vcmp.ge.s32.totalorder %v452, 0
          %vm455 = vcmp.ge.s32.totalorder %v453, 0
          %vm456 = vcmp.lt.s32.totalorder %v452, 16
          %vm457 = vcmp.lt.s32.totalorder %v453, 16
          %vm458 = vmand %vm454, %vm456
          %vm459 = vmand %vm455, %vm457
          %v461 = vperm.slane %v451, 0
          %v462 = vperm.slane %v451, 1
          %v463 = vperm.slane %v451, 2
          %464 = vrot.lane.b32.xlu0 %v461, 51
          %v465 = vpop.permute.xlu0 %464
          %466 = vrot.lane.b32.xlu0 %v462, 51
          %v467 = vpop.permute.xlu0 %466
          %468 = vrot.lane.b32.xlu0 %v463, 51
          %v469 = vpop.permute.xlu0 %468
          %vm470 = vcmask 416768
          %v471 = vsel %vm470, %v465, %v467
          %v472 = vsel %vm470, %v467, %v469
          %v475 = vsel %vm458, %v471, 0.0
          %v476 = vsel %vm459, %v472, 0.0
          %v477 = vadd.f32 %v475, 0.0
          %v478 = vadd.f32 %v476, 0.0
          %s479 = sld [smem:[#allocation5 + $0x1]]
          %v480 = vstv %s479
          %v481 = vmul.f32 %v314, %v480
          %v482 = vadd.f32 %v481, 0.0
          %s483 = sld [smem:[#allocation5 + $0x8]]
          %v484 = vstv %s483
          %v485 = vmul.f32 %v314, %v484
          %487 = vrot.lane.b32.xlu0 %v485, 112
          %v488 = vpop.permute.xlu0 %487
          %v489 = vrot.slane %v488, 1
          %v490 = vsel %vm325, %v488, %v489
          %v492 = vadd.f32 %v482, %v490
          %s493 = sld [smem:[#allocation5 + $0xf]]
          %v494 = vstv %s493
          %v495 = vmul.f32 %v314, %v494
          %497 = vrot.lane.b32.xlu0 %v495, 96
          %v498 = vpop.permute.xlu0 %497
          %v499 = vrot.slane %v498, 1
          %v500 = vsel %vm336, %v498, %v499
          %v502 = vadd.f32 %v492, %v500
          %s503 = sld [smem:[#allocation5 + $0x16]]
          %v504 = vstv %s503
          %v505 = vmul.f32 %v314, %v504
          %507 = vrot.lane.b32.xlu0 %v505, 80
          %v508 = vpop.permute.xlu0 %507
          %v509 = vrot.slane %v508, 1
          %v510 = vsel %vm347, %v508, %v509
          %v512 = vadd.f32 %v502, %v510
          %s513 = sld [smem:[#allocation5 + $0x1d]]
          %v514 = vstv %s513
          %v515 = vmul.f32 %v352, %v514
          %517 = vrot.lane.b32.xlu0 %v515, 64
          %v518 = vpop.permute.xlu0 %517
          %v519 = vrot.slane %v518, 7
          %v520 = vsel %vm359, %v519, %v518
          %v522 = vadd.f32 %v512, %v520
          %s523 = sld [smem:[#allocation5 + $0x24]]
          %v524 = vstv %s523
          %v525 = vmul.f32 %v352, %v524
          %527 = vrot.lane.b32.xlu0 %v525, 48
          %v528 = vpop.permute.xlu0 %527
          %v529 = vrot.slane %v528, 7
          %v530 = vsel %vm370, %v529, %v528
          %v532 = vadd.f32 %v522, %v530
          %s533 = sld [smem:[#allocation5 + $0x2b]]
          %v534 = vstv %s533
          %v535 = vmul.f32 %v352, %v534
          %537 = vrot.lane.b32.xlu0 %v535, 32
          %v538 = vpop.permute.xlu0 %537
          %v539 = vrot.slane %v538, 7
          %v540 = vsel %vm381, %v539, %v538
          %v542 = vadd.f32 %v532, %v540
          %s543 = sld [smem:[#allocation5 + $0x32]]
          %v544 = vstv %s543
          %v545 = vmul.f32 %v387, %v544
          %v546 = vadd.f32 %v542, %v545
          %s547 = sld [smem:[#allocation5 + $0x39]]
          %v548 = vstv %s547
          %v549 = vmul.f32 %v387, %v548
          %551 = vrot.lane.b32.xlu0 %v549, 112
          %v552 = vpop.permute.xlu0 %551
          %v553 = vrot.slane %v552, 1
          %v554 = vsel %vm325, %v552, %v553
          %v556 = vadd.f32 %v546, %v554
          %s557 = sld [smem:[#allocation5 + $0x40]]
          %v558 = vstv %s557
          %v559 = vmul.f32 %v387, %v558
          %561 = vrot.lane.b32.xlu0 %v559, 96
          %v562 = vpop.permute.xlu0 %561
          %v563 = vrot.slane %v562, 1
          %v564 = vsel %vm336, %v562, %v563
          %v566 = vadd.f32 %v556, %v564
          %s567 = sld [smem:[#allocation5 + $0x47]]
          %v568 = vstv %s567
          %v569 = vmul.f32 %v387, %v568
          %571 = vrot.lane.b32.xlu0 %v569, 80
          %v572 = vpop.permute.xlu0 %571
          %v573 = vrot.slane %v572, 1
          %v574 = vsel %vm347, %v572, %v573
          %v576 = vadd.f32 %v566, %v574
          %s577 = sld [smem:[#allocation5 + $0x4e]]
          %v578 = vstv %s577
          %v579 = vmul.f32 %v422, %v578
          %581 = vrot.lane.b32.xlu0 %v579, 64
          %v582 = vpop.permute.xlu0 %581
          %v583 = vrot.slane %v582, 7
          %v584 = vsel %vm359, %v583, %v582
          %v586 = vadd.f32 %v576, %v584
          %s587 = sld [smem:[#allocation5 + $0x55]]
          %v588 = vstv %s587
          %v589 = vmul.f32 %v422, %v588
          %591 = vrot.lane.b32.xlu0 %v589, 48
          %v592 = vpop.permute.xlu0 %591
          %v593 = vrot.slane %v592, 7
          %v594 = vsel %vm370, %v593, %v592
          %v596 = vadd.f32 %v586, %v594
          %s597 = sld [smem:[#allocation5 + $0x5c]]
          %v598 = vstv %s597
          %v599 = vmul.f32 %v422, %v598
          %601 = vrot.lane.b32.xlu0 %v599, 32
          %v602 = vpop.permute.xlu0 %601
          %v603 = vrot.slane %v602, 7
          %v604 = vsel %vm381, %v603, %v602
          %v606 = vadd.f32 %v596, %v604
          %v607 = vadd.s32 %v311, 4294967294
          %v608 = vadd.s32 %v312, 4294967294
          %vm609 = vcmp.ge.s32.totalorder %v607, 0
          %vm610 = vcmp.ge.s32.totalorder %v608, 0
          %vm611 = vcmp.lt.s32.totalorder %v607, 16
          %vm612 = vcmp.lt.s32.totalorder %v608, 16
          %vm613 = vmand %vm609, %vm611
          %vm614 = vmand %vm610, %vm612
          %v616 = vperm.slane %v606, 0
          %v617 = vperm.slane %v606, 1
          %v618 = vperm.slane %v606, 2
          %619 = vrot.lane.b32.xlu0 %v616, 50
          %v620 = vpop.permute.xlu0 %619
          %621 = vrot.lane.b32.xlu0 %v617, 50
          %v622 = vpop.permute.xlu0 %621
          %623 = vrot.lane.b32.xlu0 %v618, 50
          %v624 = vpop.permute.xlu0 %623
          %vm625 = vcmask 408576
          %v626 = vsel %vm625, %v620, %v622
          %v627 = vsel %vm625, %v622, %v624
          %v630 = vsel %vm613, %v626, 0.0
          %v631 = vsel %vm614, %v627, 0.0
          %v632 = vadd.f32 %v477, %v630
          %v633 = vadd.f32 %v478, %v631
          %s634 = sld [smem:[#allocation5 + $0x2]]
          %v635 = vstv %s634
          %v636 = vmul.f32 %v314, %v635
          %v637 = vadd.f32 %v636, 0.0
          %s638 = sld [smem:[#allocation5 + $0x9]]
          %v639 = vstv %s638
          %v640 = vmul.f32 %v314, %v639
          %642 = vrot.lane.b32.xlu0 %v640, 112
          %v643 = vpop.permute.xlu0 %642
          %v644 = vrot.slane %v643, 1
          %v645 = vsel %vm325, %v643, %v644
          %v647 = vadd.f32 %v637, %v645
          %s648 = sld [smem:[#allocation5 + $0x10]]
          %v649 = vstv %s648
          %v650 = vmul.f32 %v314, %v649
          %652 = vrot.lane.b32.xlu0 %v650, 96
          %v653 = vpop.permute.xlu0 %652
          %v654 = vrot.slane %v653, 1
          %v655 = vsel %vm336, %v653, %v654
          %v657 = vadd.f32 %v647, %v655
          %s658 = sld [smem:[#allocation5 + $0x17]]
          %v659 = vstv %s658
          %v660 = vmul.f32 %v314, %v659
          %662 = vrot.lane.b32.xlu0 %v660, 80
          %v663 = vpop.permute.xlu0 %662
          %v664 = vrot.slane %v663, 1
          %v665 = vsel %vm347, %v663, %v664
          %v667 = vadd.f32 %v657, %v665
          %s668 = sld [smem:[#allocation5 + $0x1e]]
          %v669 = vstv %s668
          %v670 = vmul.f32 %v352, %v669
          %672 = vrot.lane.b32.xlu0 %v670, 64
          %v673 = vpop.permute.xlu0 %672
          %v674 = vrot.slane %v673, 7
          %v675 = vsel %vm359, %v674, %v673
          %v677 = vadd.f32 %v667, %v675
          %s678 = sld [smem:[#allocation5 + $0x25]]
          %v679 = vstv %s678
          %v680 = vmul.f32 %v352, %v679
          %682 = vrot.lane.b32.xlu0 %v680, 48
          %v683 = vpop.permute.xlu0 %682
          %v684 = vrot.slane %v683, 7
          %v685 = vsel %vm370, %v684, %v683
          %v687 = vadd.f32 %v677, %v685
          %s688 = sld [smem:[#allocation5 + $0x2c]]
          %v689 = vstv %s688
          %v690 = vmul.f32 %v352, %v689
          %692 = vrot.lane.b32.xlu0 %v690, 32
          %v693 = vpop.permute.xlu0 %692
          %v694 = vrot.slane %v693, 7
          %v695 = vsel %vm381, %v694, %v693
          %v697 = vadd.f32 %v687, %v695
          %s698 = sld [smem:[#allocation5 + $0x33]]
          %v699 = vstv %s698
          %v700 = vmul.f32 %v387, %v699
          %v701 = vadd.f32 %v697, %v700
          %s702 = sld [smem:[#allocation5 + $0x3a]]
          %v703 = vstv %s702
          %v704 = vmul.f32 %v387, %v703
          %706 = vrot.lane.b32.xlu0 %v704, 112
          %v707 = vpop.permute.xlu0 %706
          %v708 = vrot.slane %v707, 1
          %v709 = vsel %vm325, %v707, %v708
          %v711 = vadd.f32 %v701, %v709
          %s712 = sld [smem:[#allocation5 + $0x41]]
          %v713 = vstv %s712
          %v714 = vmul.f32 %v387, %v713
          %716 = vrot.lane.b32.xlu0 %v714, 96
          %v717 = vpop.permute.xlu0 %716
          %v718 = vrot.slane %v717, 1
          %v719 = vsel %vm336, %v717, %v718
          %v721 = vadd.f32 %v711, %v719
          %s722 = sld [smem:[#allocation5 + $0x48]]
          %v723 = vstv %s722
          %v724 = vmul.f32 %v387, %v723
          %726 = vrot.lane.b32.xlu0 %v724, 80
          %v727 = vpop.permute.xlu0 %726
          %v728 = vrot.slane %v727, 1
          %v729 = vsel %vm347, %v727, %v728
          %v731 = vadd.f32 %v721, %v729
          %s732 = sld [smem:[#allocation5 + $0x4f]]
          %v733 = vstv %s732
          %v734 = vmul.f32 %v422, %v733
          %736 = vrot.lane.b32.xlu0 %v734, 64
          %v737 = vpop.permute.xlu0 %736
          %v738 = vrot.slane %v737, 7
          %v739 = vsel %vm359, %v738, %v737
          %v741 = vadd.f32 %v731, %v739
          %s742 = sld [smem:[#allocation5 + $0x56]]
          %v743 = vstv %s742
          %v744 = vmul.f32 %v422, %v743
          %746 = vrot.lane.b32.xlu0 %v744, 48
          %v747 = vpop.permute.xlu0 %746
          %v748 = vrot.slane %v747, 7
          %v749 = vsel %vm370, %v748, %v747
          %v751 = vadd.f32 %v741, %v749
          %s752 = sld [smem:[#allocation5 + $0x5d]]
          %v753 = vstv %s752
          %v754 = vmul.f32 %v422, %v753
          %756 = vrot.lane.b32.xlu0 %v754, 32
          %v757 = vpop.permute.xlu0 %756
          %v758 = vrot.slane %v757, 7
          %v759 = vsel %vm381, %v758, %v757
          %v761 = vadd.f32 %v751, %v759
          %v762 = vadd.s32 %v311, 4294967295
          %v763 = vadd.s32 %v312, 4294967295
          %vm764 = vcmp.ge.s32.totalorder %v762, 0
          %vm765 = vcmp.ge.s32.totalorder %v763, 0
          %vm766 = vcmp.lt.s32.totalorder %v762, 16
          %vm767 = vcmp.lt.s32.totalorder %v763, 16
          %vm768 = vmand %vm764, %vm766
          %vm769 = vmand %vm765, %vm767
          %v771 = vperm.slane %v761, 0
          %v772 = vperm.slane %v761, 1
          %v773 = vperm.slane %v761, 2
          %774 = vrot.lane.b32.xlu0 %v771, 49
          %v775 = vpop.permute.xlu0 %774
          %776 = vrot.lane.b32.xlu0 %v772, 49
          %v777 = vpop.permute.xlu0 %776
          %778 = vrot.lane.b32.xlu0 %v773, 49
          %v779 = vpop.permute.xlu0 %778
          %vm780 = vcmask 400384
          %v781 = vsel %vm780, %v775, %v777
          %v782 = vsel %vm780, %v777, %v779
          %v785 = vsel %vm768, %v781, 0.0
          %v786 = vsel %vm769, %v782, 0.0
          %v787 = vadd.f32 %v632, %v785
          %v788 = vadd.f32 %v633, %v786
          %s789 = sld [smem:[#allocation5 + $0x3]]
          %v790 = vstv %s789
          %v791 = vmul.f32 %v314, %v790
          %v792 = vadd.f32 %v791, 0.0
          %s793 = sld [smem:[#allocation5 + $0xa]]
          %v794 = vstv %s793
          %v795 = vmul.f32 %v314, %v794
          %797 = vrot.lane.b32.xlu0 %v795, 112
          %v798 = vpop.permute.xlu0 %797
          %v799 = vrot.slane %v798, 1
          %v800 = vsel %vm325, %v798, %v799
          %v802 = vadd.f32 %v792, %v800
          %s803 = sld [smem:[#allocation5 + $0x11]]
          %v804 = vstv %s803
          %v805 = vmul.f32 %v314, %v804
          %807 = vrot.lane.b32.xlu0 %v805, 96
          %v808 = vpop.permute.xlu0 %807
          %v809 = vrot.slane %v808, 1
          %v810 = vsel %vm336, %v808, %v809
          %v812 = vadd.f32 %v802, %v810
          %s813 = sld [smem:[#allocation5 + $0x18]]
          %v814 = vld [vmem:[%s277] ss:$2 sm:$0x3]
          %v815 = vstv %s813
          %v816 = vmul.f32 %v814, %v815
          %818 = vrot.lane.b32.xlu0 %v816, 80
          %v819 = vpop.permute.xlu0 %818
          %v820 = vrot.slane %v819, 7
          %v821 = vsel %vm347, %v820, %v819
          %v823 = vadd.f32 %v812, %v821
          %s824 = sld [smem:[#allocation5 + $0x1f]]
          %v825 = vstv %s824
          %v826 = vmul.f32 %v352, %v825
          %828 = vrot.lane.b32.xlu0 %v826, 64
          %v829 = vpop.permute.xlu0 %828
          %v830 = vrot.slane %v829, 7
          %v831 = vsel %vm359, %v830, %v829
          %v833 = vadd.f32 %v823, %v831
          %s834 = sld [smem:[#allocation5 + $0x26]]
          %v835 = vstv %s834
          %v836 = vmul.f32 %v352, %v835
          %838 = vrot.lane.b32.xlu0 %v836, 48
          %v839 = vpop.permute.xlu0 %838
          %v840 = vrot.slane %v839, 7
          %v841 = vsel %vm370, %v840, %v839
          %v843 = vadd.f32 %v833, %v841
          %s844 = sld [smem:[#allocation5 + $0x2d]]
          %v845 = vstv %s844
          %v846 = vmul.f32 %v352, %v845
          %848 = vrot.lane.b32.xlu0 %v846, 32
          %v849 = vpop.permute.xlu0 %848
          %v850 = vrot.slane %v849, 7
          %v851 = vsel %vm381, %v850, %v849
          %v853 = vadd.f32 %v843, %v851
          %s854 = sld [smem:[#allocation5 + $0x34]]
          %v855 = vstv %s854
          %v856 = vmul.f32 %v387, %v855
          %v857 = vadd.f32 %v853, %v856
          %s858 = sld [smem:[#allocation5 + $0x3b]]
          %v859 = vstv %s858
          %v860 = vmul.f32 %v387, %v859
          %862 = vrot.lane.b32.xlu0 %v860, 112
          %v863 = vpop.permute.xlu0 %862
          %v864 = vrot.slane %v863, 1
          %v865 = vsel %vm325, %v863, %v864
          %v867 = vadd.f32 %v857, %v865
          %s868 = sld [smem:[#allocation5 + $0x42]]
          %v869 = vstv %s868
          %v870 = vmul.f32 %v387, %v869
          %872 = vrot.lane.b32.xlu0 %v870, 96
          %v873 = vpop.permute.xlu0 %872
          %v874 = vrot.slane %v873, 1
          %v875 = vsel %vm336, %v873, %v874
          %v877 = vadd.f32 %v867, %v875
          %s878 = sld [smem:[#allocation5 + $0x49]]
          %v879 = vld [vmem:[%s284] ss:$2 sm:$0x3]
          %v880 = vstv %s878
          %v881 = vmul.f32 %v879, %v880
          %883 = vrot.lane.b32.xlu0 %v881, 80
          %v884 = vpop.permute.xlu0 %883
          %v885 = vrot.slane %v884, 7
          %v886 = vsel %vm347, %v885, %v884
          %v888 = vadd.f32 %v877, %v886
          %s889 = sld [smem:[#allocation5 + $0x50]]
          %v890 = vstv %s889
          %v891 = vmul.f32 %v422, %v890
          %893 = vrot.lane.b32.xlu0 %v891, 64
          %v894 = vpop.permute.xlu0 %893
          %v895 = vrot.slane %v894, 7
          %v896 = vsel %vm359, %v895, %v894
          %v898 = vadd.f32 %v888, %v896
          %s899 = sld [smem:[#allocation5 + $0x57]]
          %v900 = vstv %s899
          %v901 = vmul.f32 %v422, %v900
          %903 = vrot.lane.b32.xlu0 %v901, 48
          %v904 = vpop.permute.xlu0 %903
          %v905 = vrot.slane %v904, 7
          %v906 = vsel %vm370, %v905, %v904
          %v908 = vadd.f32 %v898, %v906
          %s909 = sld [smem:[#allocation5 + $0x5e]]
          %v910 = vstv %s909
          %v911 = vmul.f32 %v422, %v910
          %913 = vrot.lane.b32.xlu0 %v911, 32
          %v914 = vpop.permute.xlu0 %913
          %v915 = vrot.slane %v914, 7
          %v916 = vsel %vm381, %v915, %v914
          %v918 = vadd.f32 %v908, %v916
          %v920 = vperm.slane %v918, 0
          %v921 = vperm.slane %v918, 1
          %v922 = vperm.slane %v918, 2
          %923 = vrot.lane.b32.xlu0 %v920, 48
          %v924 = vpop.permute.xlu0 %923
          %925 = vrot.lane.b32.xlu0 %v921, 48
          %v926 = vpop.permute.xlu0 %925
          %927 = vrot.lane.b32.xlu0 %v922, 48
          %v928 = vpop.permute.xlu0 %927
          %v929 = vsel %vm370, %v924, %v926
          %v930 = vsel %vm370, %v926, %v928
          %v933 = vadd.f32 %v787, %v929
          %v934 = vadd.f32 %v788, %v930
          %s935 = sld [smem:[#allocation5 + $0x4]]
          %v936 = vstv %s935
          %v937 = vmul.f32 %v314, %v936
          %v938 = vadd.f32 %v937, 0.0
          %s939 = sld [smem:[#allocation5 + $0xb]]
          %v940 = vstv %s939
          %v941 = vmul.f32 %v314, %v940
          %943 = vrot.lane.b32.xlu0 %v941, 112
          %v944 = vpop.permute.xlu0 %943
          %v945 = vrot.slane %v944, 1
          %v946 = vsel %vm325, %v944, %v945
          %v948 = vadd.f32 %v938, %v946
          %s949 = sld [smem:[#allocation5 + $0x12]]
          %v950 = vstv %s949
          %v951 = vmul.f32 %v314, %v950
          %953 = vrot.lane.b32.xlu0 %v951, 96
          %v954 = vpop.permute.xlu0 %953
          %v955 = vrot.slane %v954, 1
          %v956 = vsel %vm336, %v954, %v955
          %v958 = vadd.f32 %v948, %v956
          %s959 = sld [smem:[#allocation5 + $0x19]]
          %v960 = vstv %s959
          %v961 = vmul.f32 %v352, %v960
          %963 = vrot.lane.b32.xlu0 %v961, 80
          %v964 = vpop.permute.xlu0 %963
          %v965 = vrot.slane %v964, 7
          %v966 = vsel %vm347, %v965, %v964
          %v968 = vadd.f32 %v958, %v966
          %s969 = sld [smem:[#allocation5 + $0x20]]
          %v970 = vstv %s969
          %v971 = vmul.f32 %v352, %v970
          %973 = vrot.lane.b32.xlu0 %v971, 64
          %v974 = vpop.permute.xlu0 %973
          %v975 = vrot.slane %v974, 7
          %v976 = vsel %vm359, %v975, %v974
          %v978 = vadd.f32 %v968, %v976
          %s979 = sld [smem:[#allocation5 + $0x27]]
          %v980 = vstv %s979
          %v981 = vmul.f32 %v352, %v980
          %983 = vrot.lane.b32.xlu0 %v981, 48
          %v984 = vpop.permute.xlu0 %983
          %v985 = vrot.slane %v984, 7
          %v986 = vsel %vm370, %v985, %v984
          %v988 = vadd.f32 %v978, %v986
          %s989 = sld [smem:[#allocation5 + $0x2e]]
          %v990 = vstv %s989
          %v991 = vmul.f32 %v352, %v990
          %993 = vrot.lane.b32.xlu0 %v991, 32
          %v994 = vpop.permute.xlu0 %993
          %v995 = vrot.slane %v994, 7
          %v996 = vsel %vm381, %v995, %v994
          %v998 = vadd.f32 %v988, %v996
          %s999 = sld [smem:[#allocation5 + $0x35]]
          %v1000 = vstv %s999
          %v1001 = vmul.f32 %v387, %v1000
          %v1002 = vadd.f32 %v998, %v1001
          %s1003 = sld [smem:[#allocation5 + $0x3c]]
          %v1004 = vstv %s1003
          %v1005 = vmul.f32 %v387, %v1004
          %1007 = vrot.lane.b32.xlu0 %v1005, 112
          %v1008 = vpop.permute.xlu0 %1007
          %v1009 = vrot.slane %v1008, 1
          %v1010 = vsel %vm325, %v1008, %v1009
          %v1012 = vadd.f32 %v1002, %v1010
          %s1013 = sld [smem:[#allocation5 + $0x43]]
          %v1014 = vstv %s1013
          %v1015 = vmul.f32 %v387, %v1014
          %1017 = vrot.lane.b32.xlu0 %v1015, 96
          %v1018 = vpop.permute.xlu0 %1017
          %v1019 = vrot.slane %v1018, 1
          %v1020 = vsel %vm336, %v1018, %v1019
          %v1022 = vadd.f32 %v1012, %v1020
          %s1023 = sld [smem:[#allocation5 + $0x4a]]
          %v1024 = vstv %s1023
          %v1025 = vmul.f32 %v422, %v1024
          %1027 = vrot.lane.b32.xlu0 %v1025, 80
          %v1028 = vpop.permute.xlu0 %1027
          %v1029 = vrot.slane %v1028, 7
          %v1030 = vsel %vm347, %v1029, %v1028
          %v1032 = vadd.f32 %v1022, %v1030
          %s1033 = sld [smem:[#allocation5 + $0x51]]
          %v1034 = vstv %s1033
          %v1035 = vmul.f32 %v422, %v1034
          %1037 = vrot.lane.b32.xlu0 %v1035, 64
          %v1038 = vpop.permute.xlu0 %1037
          %v1039 = vrot.slane %v1038, 7
          %v1040 = vsel %vm359, %v1039, %v1038
          %v1042 = vadd.f32 %v1032, %v1040
          %s1043 = sld [smem:[#allocation5 + $0x58]]
          %v1044 = vstv %s1043
          %v1045 = vmul.f32 %v422, %v1044
          %1047 = vrot.lane.b32.xlu0 %v1045, 48
          %v1048 = vpop.permute.xlu0 %1047
          %v1049 = vrot.slane %v1048, 7
          %v1050 = vsel %vm370, %v1049, %v1048
          %v1052 = vadd.f32 %v1042, %v1050
          %s1053 = sld [smem:[#allocation5 + $0x5f]]
          %v1054 = vstv %s1053
          %v1055 = vmul.f32 %v422, %v1054
          %1057 = vrot.lane.b32.xlu0 %v1055, 32
          %v1058 = vpop.permute.xlu0 %1057
          %v1059 = vrot.slane %v1058, 7
          %v1060 = vsel %vm381, %v1059, %v1058
          %v1062 = vadd.f32 %v1052, %v1060
          %v1063 = vadd.s32 %v311, 1
          %v1064 = vadd.s32 %v312, 1
          %vm1065 = vcmp.ge.s32.totalorder %v1063, 0
          %vm1066 = vcmp.ge.s32.totalorder %v1064, 0
          %vm1067 = vcmp.lt.s32.totalorder %v1063, 16
          %vm1068 = vcmp.lt.s32.totalorder %v1064, 16
          %vm1069 = vmand %vm1065, %vm1067
          %vm1070 = vmand %vm1066, %vm1068
          %v1072 = vperm.slane %v1062, 0
          %v1073 = vperm.slane %v1062, 1
          %v1074 = vperm.slane %v1062, 2
          %1075 = vrot.lane.b32.xlu0 %v1072, 47
          %v1076 = vpop.permute.xlu0 %1075
          %1077 = vrot.lane.b32.xlu0 %v1073, 47
          %v1078 = vpop.permute.xlu0 %1077
          %1079 = vrot.lane.b32.xlu0 %v1074, 47
          %v1080 = vpop.permute.xlu0 %1079
          %vm1081 = vcmask 384000
          %v1082 = vsel %vm1081, %v1076, %v1078
          %v1083 = vsel %vm1081, %v1078, %v1080
          %v1086 = vsel %vm1069, %v1082, 0.0
          %v1087 = vsel %vm1070, %v1083, 0.0
          %v1088 = vadd.f32 %v933, %v1086
          %v1089 = vadd.f32 %v934, %v1087
          %s1090 = sld [smem:[#allocation5 + $0x5]]
          %v1091 = vstv %s1090
          %v1092 = vmul.f32 %v314, %v1091
          %v1093 = vadd.f32 %v1092, 0.0
          %s1094 = sld [smem:[#allocation5 + $0xc]]
          %v1095 = vstv %s1094
          %v1096 = vmul.f32 %v314, %v1095
          %1098 = vrot.lane.b32.xlu0 %v1096, 112
          %v1099 = vpop.permute.xlu0 %1098
          %v1100 = vrot.slane %v1099, 1
          %v1101 = vsel %vm325, %v1099, %v1100
          %v1103 = vadd.f32 %v1093, %v1101
          %s1104 = sld [smem:[#allocation5 + $0x13]]
          %v1105 = vstv %s1104
          %v1106 = vmul.f32 %v314, %v1105
          %1108 = vrot.lane.b32.xlu0 %v1106, 96
          %v1109 = vpop.permute.xlu0 %1108
          %v1110 = vrot.slane %v1109, 1
          %v1111 = vsel %vm336, %v1109, %v1110
          %v1113 = vadd.f32 %v1103, %v1111
          %s1114 = sld [smem:[#allocation5 + $0x1a]]
          %v1115 = vstv %s1114
          %v1116 = vmul.f32 %v352, %v1115
          %1118 = vrot.lane.b32.xlu0 %v1116, 80
          %v1119 = vpop.permute.xlu0 %1118
          %v1120 = vrot.slane %v1119, 7
          %v1121 = vsel %vm347, %v1120, %v1119
          %v1123 = vadd.f32 %v1113, %v1121
          %s1124 = sld [smem:[#allocation5 + $0x21]]
          %v1125 = vstv %s1124
          %v1126 = vmul.f32 %v352, %v1125
          %1128 = vrot.lane.b32.xlu0 %v1126, 64
          %v1129 = vpop.permute.xlu0 %1128
          %v1130 = vrot.slane %v1129, 7
          %v1131 = vsel %vm359, %v1130, %v1129
          %v1133 = vadd.f32 %v1123, %v1131
          %s1134 = sld [smem:[#allocation5 + $0x28]]
          %v1135 = vstv %s1134
          %v1136 = vmul.f32 %v352, %v1135
          %1138 = vrot.lane.b32.xlu0 %v1136, 48
          %v1139 = vpop.permute.xlu0 %1138
          %v1140 = vrot.slane %v1139, 7
          %v1141 = vsel %vm370, %v1140, %v1139
          %v1143 = vadd.f32 %v1133, %v1141
          %s1144 = sld [smem:[#allocation5 + $0x2f]]
          %v1145 = vstv %s1144
          %v1146 = vmul.f32 %v352, %v1145
          %1148 = vrot.lane.b32.xlu0 %v1146, 32
          %v1149 = vpop.permute.xlu0 %1148
          %v1150 = vrot.slane %v1149, 7
          %v1151 = vsel %vm381, %v1150, %v1149
          %v1153 = vadd.f32 %v1143, %v1151
          %s1154 = sld [smem:[#allocation5 + $0x36]]
          %v1155 = vstv %s1154
          %v1156 = vmul.f32 %v387, %v1155
          %v1157 = vadd.f32 %v1153, %v1156
          %s1158 = sld [smem:[#allocation5 + $0x3d]]
          %v1159 = vstv %s1158
          %v1160 = vmul.f32 %v387, %v1159
          %1162 = vrot.lane.b32.xlu0 %v1160, 112
          %v1163 = vpop.permute.xlu0 %1162
          %v1164 = vrot.slane %v1163, 1
          %v1165 = vsel %vm325, %v1163, %v1164
          %v1167 = vadd.f32 %v1157, %v1165
          %s1168 = sld [smem:[#allocation5 + $0x44]]
          %v1169 = vstv %s1168
          %v1170 = vmul.f32 %v387, %v1169
          %1172 = vrot.lane.b32.xlu0 %v1170, 96
          %v1173 = vpop.permute.xlu0 %1172
          %v1174 = vrot.slane %v1173, 1
          %v1175 = vsel %vm336, %v1173, %v1174
          %v1177 = vadd.f32 %v1167, %v1175
          %s1178 = sld [smem:[#allocation5 + $0x4b]]
          %v1179 = vstv %s1178
          %v1180 = vmul.f32 %v422, %v1179
          %1182 = vrot.lane.b32.xlu0 %v1180, 80
          %v1183 = vpop.permute.xlu0 %1182
          %v1184 = vrot.slane %v1183, 7
          %v1185 = vsel %vm347, %v1184, %v1183
          %v1187 = vadd.f32 %v1177, %v1185
          %s1188 = sld [smem:[#allocation5 + $0x52]]
          %v1189 = vstv %s1188
          %v1190 = vmul.f32 %v422, %v1189
          %1192 = vrot.lane.b32.xlu0 %v1190, 64
          %v1193 = vpop.permute.xlu0 %1192
          %v1194 = vrot.slane %v1193, 7
          %v1195 = vsel %vm359, %v1194, %v1193
          %v1197 = vadd.f32 %v1187, %v1195
          %s1198 = sld [smem:[#allocation5 + $0x59]]
          %v1199 = vstv %s1198
          %v1200 = vmul.f32 %v422, %v1199
          %1202 = vrot.lane.b32.xlu0 %v1200, 48
          %v1203 = vpop.permute.xlu0 %1202
          %v1204 = vrot.slane %v1203, 7
          %v1205 = vsel %vm370, %v1204, %v1203
          %v1207 = vadd.f32 %v1197, %v1205
          %s1208 = sld [smem:[#allocation5 + $0x60]]
          %v1209 = vstv %s1208
          %v1210 = vmul.f32 %v422, %v1209
          %1212 = vrot.lane.b32.xlu0 %v1210, 32
          %v1213 = vpop.permute.xlu0 %1212
          %v1214 = vrot.slane %v1213, 7
          %v1215 = vsel %vm381, %v1214, %v1213
          %v1217 = vadd.f32 %v1207, %v1215
          %v1218 = vadd.s32 %v311, 2
          %v1219 = vadd.s32 %v312, 2
          %vm1220 = vcmp.ge.s32.totalorder %v1218, 0
          %vm1221 = vcmp.ge.s32.totalorder %v1219, 0
          %vm1222 = vcmp.lt.s32.totalorder %v1218, 16
          %vm1223 = vcmp.lt.s32.totalorder %v1219, 16
          %vm1224 = vmand %vm1220, %vm1222
          %vm1225 = vmand %vm1221, %vm1223
          %v1227 = vperm.slane %v1217, 0
          %v1228 = vperm.slane %v1217, 1
          %v1229 = vperm.slane %v1217, 2
          %1230 = vrot.lane.b32.xlu0 %v1227, 46
          %v1231 = vpop.permute.xlu0 %1230
          %1232 = vrot.lane.b32.xlu0 %v1228, 46
          %v1233 = vpop.permute.xlu0 %1232
          %1234 = vrot.lane.b32.xlu0 %v1229, 46
          %v1235 = vpop.permute.xlu0 %1234
          %vm1236 = vcmask 375808
          %v1237 = vsel %vm1236, %v1231, %v1233
          %v1238 = vsel %vm1236, %v1233, %v1235
          %v1241 = vsel %vm1224, %v1237, 0.0
          %v1242 = vsel %vm1225, %v1238, 0.0
          %v1243 = vadd.f32 %v1088, %v1241
          %v1244 = vadd.f32 %v1089, %v1242
          %s1245 = sld [smem:[#allocation5 + $0x6]]
          %v1246 = vstv %s1245
          %v1247 = vmul.f32 %v314, %v1246
          %v1248 = vadd.f32 %v1247, 0.0
          %s1249 = sld [smem:[#allocation5 + $0xd]]
          %v1250 = vstv %s1249
          %v1251 = vmul.f32 %v314, %v1250
          %1253 = vrot.lane.b32.xlu0 %v1251, 112
          %v1254 = vpop.permute.xlu0 %1253
          %v1255 = vrot.slane %v1254, 1
          %v1256 = vsel %vm325, %v1254, %v1255
          %v1258 = vadd.f32 %v1248, %v1256
          %s1259 = sld [smem:[#allocation5 + $0x14]]
          %v1260 = vstv %s1259
          %v1261 = vmul.f32 %v314, %v1260
          %1263 = vrot.lane.b32.xlu0 %v1261, 96
          %v1264 = vpop.permute.xlu0 %1263
          %v1265 = vrot.slane %v1264, 1
          %v1266 = vsel %vm336, %v1264, %v1265
          %v1268 = vadd.f32 %v1258, %v1266
          %s1269 = sld [smem:[#allocation5 + $0x1b]]
          %v1270 = vstv %s1269
          %v1271 = vmul.f32 %v352, %v1270
          %1273 = vrot.lane.b32.xlu0 %v1271, 80
          %v1274 = vpop.permute.xlu0 %1273
          %v1275 = vrot.slane %v1274, 7
          %v1276 = vsel %vm347, %v1275, %v1274
          %v1278 = vadd.f32 %v1268, %v1276
          %s1279 = sld [smem:[#allocation5 + $0x22]]
          %v1280 = vstv %s1279
          %v1281 = vmul.f32 %v352, %v1280
          %1283 = vrot.lane.b32.xlu0 %v1281, 64
          %v1284 = vpop.permute.xlu0 %1283
          %v1285 = vrot.slane %v1284, 7
          %v1286 = vsel %vm359, %v1285, %v1284
          %v1288 = vadd.f32 %v1278, %v1286
          %s1289 = sld [smem:[#allocation5 + $0x29]]
          %v1290 = vstv %s1289
          %v1291 = vmul.f32 %v352, %v1290
          %1293 = vrot.lane.b32.xlu0 %v1291, 48
          %v1294 = vpop.permute.xlu0 %1293
          %v1295 = vrot.slane %v1294, 7
          %v1296 = vsel %vm370, %v1295, %v1294
          %v1298 = vadd.f32 %v1288, %v1296
          %s1299 = sld [smem:[#allocation5 + $0x30]]
          %v1300 = vstv %s1299
          %v1301 = vmul.f32 %v352, %v1300
          %1303 = vrot.lane.b32.xlu0 %v1301, 32
          %v1304 = vpop.permute.xlu0 %1303
          %v1305 = vrot.slane %v1304, 7
          %v1306 = vsel %vm381, %v1305, %v1304
          %v1308 = vadd.f32 %v1298, %v1306
          %s1309 = sld [smem:[#allocation5 + $0x37]]
          %v1310 = vstv %s1309
          %v1311 = vmul.f32 %v387, %v1310
          %v1312 = vadd.f32 %v1308, %v1311
          %s1313 = sld [smem:[#allocation5 + $0x3e]]
          %v1314 = vstv %s1313
          %v1315 = vmul.f32 %v387, %v1314
          %1317 = vrot.lane.b32.xlu0 %v1315, 112
          %v1318 = vpop.permute.xlu0 %1317
          %v1319 = vrot.slane %v1318, 1
          %v1320 = vsel %vm325, %v1318, %v1319
          %v1322 = vadd.f32 %v1312, %v1320
          %s1323 = sld [smem:[#allocation5 + $0x45]]
          %v1324 = vstv %s1323
          %v1325 = vmul.f32 %v387, %v1324
          %1327 = vrot.lane.b32.xlu0 %v1325, 96
          %v1328 = vpop.permute.xlu0 %1327
          %v1329 = vrot.slane %v1328, 1
          %v1330 = vsel %vm336, %v1328, %v1329
          %v1332 = vadd.f32 %v1322, %v1330
          %s1333 = sld [smem:[#allocation5 + $0x4c]]
          %v1334 = vstv %s1333
          %v1335 = vmul.f32 %v422, %v1334
          %1337 = vrot.lane.b32.xlu0 %v1335, 80
          %v1338 = vpop.permute.xlu0 %1337
          %v1339 = vrot.slane %v1338, 7
          %v1340 = vsel %vm347, %v1339, %v1338
          %v1342 = vadd.f32 %v1332, %v1340
          %s1343 = sld [smem:[#allocation5 + $0x53]]
          %v1344 = vstv %s1343
          %v1345 = vmul.f32 %v422, %v1344
          %1347 = vrot.lane.b32.xlu0 %v1345, 64
          %v1348 = vpop.permute.xlu0 %1347
          %v1349 = vrot.slane %v1348, 7
          %v1350 = vsel %vm359, %v1349, %v1348
          %v1352 = vadd.f32 %v1342, %v1350
          %s1353 = sld [smem:[#allocation5 + $0x5a]]
          %v1354 = vstv %s1353
          %v1355 = vmul.f32 %v422, %v1354
          %1357 = vrot.lane.b32.xlu0 %v1355, 48
          %v1358 = vpop.permute.xlu0 %1357
          %v1359 = vrot.slane %v1358, 7
          %v1360 = vsel %vm370, %v1359, %v1358
          %v1362 = vadd.f32 %v1352, %v1360
          %s1363 = sld [smem:[#allocation5 + $0x61]]
          %v1364 = vstv %s1363
          %v1365 = vmul.f32 %v422, %v1364
          %1367 = vrot.lane.b32.xlu0 %v1365, 32
          %v1368 = vpop.permute.xlu0 %1367
          %v1369 = vrot.slane %v1368, 7
          %v1370 = vsel %vm381, %v1369, %v1368
          %v1372 = vadd.f32 %v1362, %v1370
          %v1373 = vadd.s32 %v311, 3
          %v1374 = vadd.s32 %v312, 3
          %vm1375 = vcmp.ge.s32.totalorder %v1373, 0
          %vm1376 = vcmp.ge.s32.totalorder %v1374, 0
          %vm1377 = vcmp.lt.s32.totalorder %v1373, 16
          %vm1378 = vcmp.lt.s32.totalorder %v1374, 16
          %vm1379 = vmand %vm1375, %vm1377
          %vm1380 = vmand %vm1376, %vm1378
          %v1382 = vperm.slane %v1372, 0
          %v1383 = vperm.slane %v1372, 1
          %v1384 = vperm.slane %v1372, 2
          %1385 = vrot.lane.b32.xlu0 %v1382, 45
          %v1386 = vpop.permute.xlu0 %1385
          %1387 = vrot.lane.b32.xlu0 %v1383, 45
          %v1388 = vpop.permute.xlu0 %1387
          %1389 = vrot.lane.b32.xlu0 %v1384, 45
          %v1390 = vpop.permute.xlu0 %1389
          %vm1391 = vcmask 367616
          %v1392 = vsel %vm1391, %v1386, %v1388
          %v1393 = vsel %vm1391, %v1388, %v1390
          %v1396 = vsel %vm1379, %v1392, 0.0
          %v1397 = vsel %vm1380, %v1393, 0.0
          %v1398 = vadd.f32 %v1243, %v1396
          %v1399 = vadd.f32 %v1244, %v1397
          %v1400 = vxor.u32 %v1398, 2147483648
          %v1401 = vxor.u32 %v1399, 2147483648
          %v1402 = vmul.f32 %v1400, 1.442695
          %v1403 = vpow.pop %v1402
          %v1404 = vmul.f32 %v1401, 1.442695
          %v1405 = vpow.pop %v1404
          %v1406 = vadd.f32 %v1403, 1.0
          %v1407 = vadd.f32 %v1405, 1.0
          %v1408 = vrcp.pop %v1406
          %v1409 = vmul.f32 %v1406, %v1408
          %v1410 = vsub.f32 1.0, %v1409
          %v1411 = vmul.f32 %v1408, %v1410
          %v1412 = vadd.f32 %v1408, %v1411
          %vm1413 = vweird.f32 %v1406
          %vm1414 = vweird.f32 %v1408
          %vm1415 = vmor %vm1413, %vm1414
          %v1416 = vsel %vm1415, %v1408, %v1412
          %v1417 = vand.u32 2147483647, %v1406
          %vm1418 = vcmp.eq.f32.partialorder %v1417, 8.507059e+37
          %v1419 = vand.u32 %v1406, 2147483648
          %v1420 = vor.u32 1.1754944e-38, %v1419
          %v1421 = vsel %vm1418, %v1420, %v1416
          %v1422 = vmul.f32 1.0, %v1421
          %v1423 = vrcp.pop %v1407
          %v1424 = vmul.f32 %v1407, %v1423
          %v1425 = vsub.f32 1.0, %v1424
          %v1426 = vmul.f32 %v1423, %v1425
          %v1427 = vadd.f32 %v1423, %v1426
          %vm1428 = vweird.f32 %v1407
          %vm1429 = vweird.f32 %v1423
          %vm1430 = vmor %vm1428, %vm1429
          %v1431 = vsel %vm1430, %v1423, %v1427
          %v1432 = vand.u32 2147483647, %v1407
          %vm1433 = vcmp.eq.f32.partialorder %v1432, 8.507059e+37
          %v1434 = vand.u32 %v1407, 2147483648
          %v1435 = vor.u32 1.1754944e-38, %v1434
          %v1436 = vsel %vm1433, %v1435, %v1431
          %v1437 = vmul.f32 1.0, %v1436
          %v1440 = vrot.slane %v1437, 7
          %v1441 = vsel %vm270, %v1422, %v1440
          %1443 = vst.msk [vmem:[%s191] sm:$0x3] %vm276, %v1441
        $region44: #{tpu_custom_call.1} parent=27 // pred_fallthru
          _
        %s1444 = sand.u32 %s89, 1
        %s1445 = scalar_lea.sflag [#allocation7], %s1444
        %s1446 = sand.u32 %s89, 1
        %s1447 = smul.addr %s1446, 2
        %s1448 = scalar_lea.vmem [#allocation10], %s1447
        // Predicated region
        $region45: #{tpu_custom_call.1} parent=27 // pred_check
          %p1449 = pneg %p99
        $region46: #{tpu_custom_call.1} parent=27 // pred_check_branch
          %1451 = sbr.rel (%p1449) target = $region48
        $region47: #{tpu_custom_call.1} parent=27 // pred_region
          %1453 = vsyncadd %s1445, 0
          %s1454 = smul.addr %s24, 2
          %s1455 = scalar_lea.hbm %s2, %s1454
          %s1457 = sshll.u32 %s1448, 4
          %s1458 = int_to_ptr.vmem [resolvable:$true] %s1457
          %s1459 = sshll.u32 %s1455, 4
          %s1460 = int_to_ptr.hbm [resolvable:$true] %s1459
          %1462 = dma.vmem_to_hbm [thread:$0]  %s1458, 32, %s1460, %s1445
        $region48: #{tpu_custom_call.1} parent=27 // pred_fallthru
          _
      $region28: #{tpu_custom_call.1} parent=5 // pred_fallthru
        _
      %p1463 = scmp.le.s32.totalorder 2, %s15
      // Predicated region
      $region49: #{tpu_custom_call.1} parent=5 // pred_check
        %p1464 = pneg %p1463
      $region50: #{tpu_custom_call.1} parent=5 // pred_check_branch
        %1466 = sbr.rel (%p1464) target = $region52
      $region51: #{tpu_custom_call.1} parent=5 // pred_region
        %s1467 = ssub.s32 %s15, 2
        // Predicated region
        $region53: #{tpu_custom_call.1} parent=51 // pred_check
          %p1468 = pneg %p105
        $region54: #{tpu_custom_call.1} parent=51 // pred_check_branch
          %1470 = sbr.rel (%p1468) target = $region56
        $region55: #{tpu_custom_call.1} parent=51 // pred_region
          %s1471 = sand.u32 %s90, 1
          %s1472 = scalar_lea.sflag [#allocation7], %s1471
          %s1473 = sand.u32 %s90, 1
          %s1474 = smul.addr %s1473, 2
          %s1475 = scalar_lea.vmem [#allocation10], %s1474
          %1477 = dma.done %s1472, 32
        $region56: #{tpu_custom_call.1} parent=51 // pred_fallthru
          _
      $region52: #{tpu_custom_call.1} parent=5 // pred_fallthru
        _
    $region6: #{tpu_custom_call.1} parent=1 // loop_footer
      %s19 = sadd.s32 1, %s15
    $region7: #{tpu_custom_call.1} parent=1 // loop_footer_branch
      %14 = sbr.rel target = $region3
    $region8: #{tpu_custom_call.1} parent=1 // loop_exit
      _
    %1478 = vsyncpa [#allocation6], 1
    %s1479 = scalar_lea.sflag [#allocation6], 1
    %1480 = vsyncpa %s1479, 1
    %1481 = vsyncpa [#allocation7], 1
    %s1482 = scalar_lea.sflag [#allocation7], 1
    %1483 = vsyncpa %s1482, 1
    %1484 = vsyncpa [#allocation8], 1
    %s1485 = scalar_lea.sflag [#allocation8], 1
    %1486 = vsyncpa %s1485, 1

</llo_original>
